<compile_context>
chip_gen: v7x
topology: tpu7x:2x2x1
jax: 0.10.0
libtpu: 0.0.40
codegen_flags: <defaults>
</compile_context>

<pallas_src>
import functools
import math

import jax
import jax.numpy as jnp
from jax.experimental import pallas as pl
from jax.experimental.pallas import tpu as pltpu

_BN_EPS = 1e-5
_TM_TARGET = 512     # M-tile rows; ~1.2 MiB bf16 patch tile at K=1152, fits all gens.


# ------------------------------ Pallas kernels ----------------------------- #
def _gemm_kernel(*refs, has_bias, relu):
    """out = [relu](patches @ W [+ bias]);  bf16 operands, f32 accumulate."""
    it = iter(refs)
    x_ref = next(it)                       # (tm, K)    bf16
    w_ref = next(it)                       # (K, Cout)  bf16 (VMEM resident)
    b_ref = next(it) if has_bias else None  # (1, Cout)  f32
    o_ref = next(it)                       # (tm, Cout) f32
    acc = jnp.dot(x_ref[...], w_ref[...], preferred_element_type=jnp.float32)
    if has_bias:
        acc = acc + b_ref[...]
    if relu:
        acc = jnp.maximum(acc, 0.0)
    o_ref[...] = acc


def _stats_kernel(x_ref, sum_ref, sq_ref):
    """Accumulate per-channel sum / sum-of-squares across the M grid axis."""
    @pl.when(pl.program_id(0) == 0)
    def _():
        sum_ref[...] = jnp.zeros_like(sum_ref)
        sq_ref[...] = jnp.zeros_like(sq_ref)

    x = x_ref[...]                                       # (tm, Cout) f32
    sum_ref[...] += jnp.sum(x, axis=0, keepdims=True)
    sq_ref[...] += jnp.sum(x * x, axis=0, keepdims=True)


def _bn_apply_kernel(*refs, has_res, relu):
    """out = [relu](x * scale + shift [+ residual]);  all f32."""
    it = iter(refs)
    x_ref = next(it)                       # (tm, Cout) f32
    scale_ref = next(it)                   # (1, Cout)  f32
    shift_ref = next(it)                   # (1, Cout)  f32
    res_ref = next(it) if has_res else None
    o_ref = next(it)
    y = x_ref[...] * scale_ref[...] + shift_ref[...]
    if has_res:
        y = y + res_ref[...]
    if relu:
        y = jnp.maximum(y, 0.0)
    o_ref[...] = y


# ------------------------------ tiling helpers ----------------------------- #
def _round_up(x, m):
    return ((x + m - 1) // m) * m


def _tiling(m):
    tm = _round_up(m, 8) if m <= _TM_TARGET else _TM_TARGET
    return tm, _round_up(m, tm)


def _pad_rows(x, m_pad):
    m = x.shape[0]
    return x if m_pad == m else jnp.pad(x, ((0, m_pad - m), (0, 0)))


# ------------------------------ pallas wrappers ----------------------------- #
def _gemm_padded(x_pad, w_mat, tm, bias=None, relu=False):
    """Tiled GEMM over padded rows: (Mp, K)@(K, Cout) [+bias] [->ReLU], f32 out."""
    mp, k = x_pad.shape
    cout = w_mat.shape[1]
    args = [x_pad, w_mat]
    in_specs = [pl.BlockSpec((tm, k), lambda i: (i, 0)),
                pl.BlockSpec((k, cout), lambda i: (0, 0))]
    if bias is not None:
        args.append(bias.reshape(1, cout).astype(jnp.float32))
        in_specs.append(pl.BlockSpec((1, cout), lambda i: (0, 0)))
    return pl.pallas_call(
        functools.partial(_gemm_kernel, has_bias=bias is not None, relu=relu),
        grid=(mp // tm,),
        in_specs=in_specs,
        out_specs=pl.BlockSpec((tm, cout), lambda i: (i, 0)),
        out_shape=jax.ShapeDtypeStruct((mp, cout), jnp.float32),
        compiler_params=pltpu.CompilerParams(dimension_semantics=("parallel",)),
        cost_estimate=pl.CostEstimate(
            flops=2 * mp * k * cout,
            transcendentals=0,
            bytes_accessed=mp * k * 2 + k * cout * 2 + mp * cout * 4),
    )(*args)


def _channel_stats(x_pad, tm):
    """Per-channel (sum, sum_sq) over rows, accumulated across M tiles."""
    mp, cout = x_pad.shape
    return pl.pallas_call(
        _stats_kernel,
        grid=(mp // tm,),
        in_specs=[pl.BlockSpec((tm, cout), lambda i: (i, 0))],
        out_specs=[pl.BlockSpec((1, cout), lambda i: (0, 0)),
                   pl.BlockSpec((1, cout), lambda i: (0, 0))],
        out_shape=[jax.ShapeDtypeStruct((1, cout), jnp.float32),
                   jax.ShapeDtypeStruct((1, cout), jnp.float32)],
        compiler_params=pltpu.CompilerParams(dimension_semantics=("arbitrary",)),
        cost_estimate=pl.CostEstimate(
            flops=3 * mp * cout, transcendentals=0,
            bytes_accessed=mp * cout * 4),
    )(x_pad)


def _bn_apply(x_pad, scale, shift, residual_pad, relu, tm):
    mp, cout = x_pad.shape
    args = [x_pad, scale.reshape(1, cout).astype(jnp.float32),
            shift.reshape(1, cout).astype(jnp.float32)]
    in_specs = [pl.BlockSpec((tm, cout), lambda i: (i, 0)),
                pl.BlockSpec((1, cout), lambda i: (0, 0)),
                pl.BlockSpec((1, cout), lambda i: (0, 0))]
    if residual_pad is not None:
        args.append(residual_pad)
        in_specs.append(pl.BlockSpec((tm, cout), lambda i: (i, 0)))
    return pl.pallas_call(
        functools.partial(_bn_apply_kernel,
                          has_res=residual_pad is not None, relu=relu),
        grid=(mp // tm,),
        in_specs=in_specs,
        out_specs=pl.BlockSpec((tm, cout), lambda i: (i, 0)),
        out_shape=jax.ShapeDtypeStruct((mp, cout), jnp.float32),
        compiler_params=pltpu.CompilerParams(dimension_semantics=("parallel",)),
    )(*args)


# --------------------------------- JAX glue --------------------------------- #
def _im2col(x_nhwc, kh, kw, stride, pad):
    # TODO(synk): im2col still materializes the (M, kh*kw*C) patch matrix in HBM
    # (9x activation blowup for the 3x3 convs); fusing the tap loop into the
    # GEMM kernel with overlapping block reads is left for a follow-up.
    x_nhwc = x_nhwc.astype(jnp.bfloat16)
    n, h, w, c = x_nhwc.shape
    xp = jnp.pad(x_nhwc, ((0, 0), (pad, pad), (pad, pad), (0, 0)))
    ho = (h + 2 * pad - kh) // stride + 1
    wo = (w + 2 * pad - kw) // stride + 1
    cols = []
    for ky in range(kh):
        for kx in range(kw):
            patch = jax.lax.slice(
                xp, (0, ky, kx, 0),
                (n, ky + (ho - 1) * stride + 1, kx + (wo - 1) * stride + 1, c),
                (1, stride, stride, 1))
            cols.append(patch)                           # (N, Ho, Wo, C)
    cols = jnp.stack(cols, axis=3)                       # (N, Ho, Wo, kh*kw, C)
    return cols.reshape(n * ho * wo, kh * kw * c), (n, ho, wo)


def _to_gemm_weight(w_oihw):
    cout, cin, kh, kw = w_oihw.shape
    # column ordering matches im2col: index = (ky*kw + kx)*Cin + c
    return jnp.transpose(w_oihw, (2, 3, 1, 0)).reshape(
        kh * kw * cin, cout).astype(jnp.bfloat16)


def conv_layer(x_nhwc, w_oihw, b, stride, pad, relu):
    cout, _, kh, kw = w_oihw.shape
    patches, (n, ho, wo) = _im2col(x_nhwc, kh, kw, stride, pad)
    m = patches.shape[0]
    tm, mp = _tiling(m)
    out = _gemm_padded(_pad_rows(patches, mp), _to_gemm_weight(w_oihw), tm,
                       bias=b, relu=relu)
    return out[:m].reshape(n, ho, wo, cout)


def conv_bn_relu(x_nhwc, w_oihw, gamma, beta, residual_flat=None):
    """Conv3x3(pad=1) -> BatchNorm(batch stats) [-> +residual] -> ReLU."""
    n, h, w, _ = x_nhwc.shape
    cout = w_oihw.shape[0]
    patches, _ = _im2col(x_nhwc, 3, 3, 1, 1)
    m = patches.shape[0]
    tm, mp = _tiling(m)
    # Conv bias is intentionally dropped: BatchNorm's mean subtraction cancels
    # it exactly (variance unchanged by a per-channel constant shift).
    conv_pad = _gemm_padded(_pad_rows(patches, mp), _to_gemm_weight(w_oihw), tm)
    s, q = _channel_stats(conv_pad, tm)                  # padded rows are exact 0
    mean = s[0] / m
    var = jnp.maximum(q[0] / m - mean * mean, 0.0)       # biased batch variance
    scale = gamma * jax.lax.rsqrt(var + _BN_EPS)
    shift = beta - mean * scale
    res_pad = _pad_rows(residual_flat, mp) if residual_flat is not None else None
    out = _bn_apply(conv_pad, scale, shift, res_pad, relu=True, tm=tm)
    return out[:m].reshape(n, h, w, cout)


def residual_block(x_nhwc, p):
    n, h, w, c = x_nhwc.shape
    res_flat = x_nhwc.reshape(n * h * w, c)
    h1 = conv_bn_relu(x_nhwc, p['w1'], p['g1'], p['be1'])
    return conv_bn_relu(h1, p['w2'], p['g2'], p['be2'], residual_flat=res_flat)


def head_conv(x_nhwc, w_oihw, b):
    # Pad Cout up to 128 for lane-dense output stores, slice back afterwards.
    cout = w_oihw.shape[0]
    cpad = max(_round_up(cout, 128), 128)
    if cpad != cout:
        w_oihw = jnp.pad(w_oihw, ((0, cpad - cout), (0, 0), (0, 0), (0, 0)))
        b = jnp.pad(b, (0, cpad - cout))
    y = conv_layer(x_nhwc, w_oihw, b, stride=1, pad=0, relu=False)
    return y[..., :cout]


# ------------------------------ params / forward ---------------------------- #
def init_params(key, input_channels=3, output_channels=64):
    def conv_init(k, cin, cout, ksize):
        k1, k2 = jax.random.split(k)
        fan_in = cin * ksize * ksize
        w = jax.random.normal(k1, (cout, cin, ksize, ksize),
                              jnp.float32) / math.sqrt(fan_in)
        b = 0.01 * jax.random.normal(k2, (cout,), jnp.float32)
        return w, b

    keys = jax.random.split(key, 16)
    params = {}
    params['ds1_w'], params['ds1_b'] = conv_init(keys[0], input_channels, 64, 4)
    params['ds2_w'], params['ds2_b'] = conv_init(keys[1], 64, 128, 4)
    params['rb'] = []
    for i in range(5):
        w1, b1 = conv_init(keys[2 + 2 * i], 128, 128, 3)
        w2, b2 = conv_init(keys[3 + 2 * i], 128, 128, 3)
        params['rb'].append(dict(
            w1=w1, b1=b1,   # conv biases kept for parity; cancelled by BN
            g1=jnp.ones((128,), jnp.float32), be1=jnp.zeros((128,), jnp.float32),
            w2=w2, b2=b2,
            g2=jnp.ones((128,), jnp.float32), be2=jnp.zeros((128,), jnp.float32)))
    params['head_w'], params['head_b'] = conv_init(keys[12], 128,
                                                   output_channels, 1)
    return params


def semantic_learner_forward(img_nchw, params):
    x = jnp.transpose(img_nchw, (0, 2, 3, 1)).astype(jnp.float32)   # NHWC
    # downsampling: Conv(k4,s2,p1)+ReLU, Conv(k4,s2,p1)+ReLU
    x = conv_layer(x, params['ds1_w'], params['ds1_b'], stride=2, pad=1, relu=True)
    x = conv_layer(x, params['ds2_w'], params['ds2_b'], stride=2, pad=1, relu=True)
    # 5 residual blocks (128 -> 128)
    for p in params['rb']:
        x = residual_block(x, p)
    # 1x1 projection head (no activation)
    x = head_conv(x, params['head_w'], params['head_b'])
    # TODO(synk): BatchNorm running-stat (momentum buffer) updates are training
    # side effects and are not emitted; normalization itself uses batch stats.
    return jnp.transpose(x, (0, 3, 1, 2))                           # NCHW


if __name__ == "__main__":
    key = jax.random.PRNGKey(0)
    k_img, k_par = jax.random.split(key)
    img = jax.random.normal(k_img, (2, 3, 16, 16), jnp.float32)
    params = init_params(k_par)
    fwd = jax.jit(semantic_learner_forward)
    out = jax.block_until_ready(fwd(img, params))
    assert out.shape == (2, 64, 4, 4), out.shape
    assert bool(jnp.all(jnp.isfinite(out)))
    print("KERNEL_OK")
</pallas_src>

<mosaic_0001>
module attributes {stable_mosaic.version = 11 : i64} {
  func.func @_gemm_kernel(%arg0: i32, %arg1: memref<128x48xbf16, #tpu.memory_space<vmem>>, %arg2: memref<48x64xbf16, #tpu.memory_space<vmem>>, %arg3: memref<1x64xf32, #tpu.memory_space<vmem>>, %arg4: memref<128x64xf32, #tpu.memory_space<vmem>>) attributes {dimension_semantics = [#tpu.dimension_semantics<parallel>], iteration_bounds = array<i64: 1>, scalar_prefetch = 0 : i64, scratch_operands = 0 : i64, tpu.core_type = #tpu.core_type<tc>, window_params = [{transform_indices = @transform_0, window_bounds = array<i64: 128, 48>}, {pipeline_mode = #tpu.pipeline_mode<synchronous>, transform_indices = @transform_1, window_bounds = array<i64: 48, 64>}, {pipeline_mode = #tpu.pipeline_mode<synchronous>, transform_indices = @transform_2, window_bounds = array<i64: 1, 64>}, {transform_indices = @transform_3, window_bounds = array<i64: 128, 64>}]} {
    %c0 = arith.constant 0 : index
    %c0_0 = arith.constant 0 : index
    %0 = vector.load %arg1[%c0, %c0_0] : memref<128x48xbf16, #tpu.memory_space<vmem>>, vector<128x48xbf16>
    %c0_1 = arith.constant 0 : index
    %c0_2 = arith.constant 0 : index
    %1 = vector.load %arg2[%c0_1, %c0_2] : memref<48x64xbf16, #tpu.memory_space<vmem>>, vector<48x64xbf16>
    %cst = arith.constant dense<0.000000e+00> : vector<128x64xf32>
    %2 = tpu.matmul %0, %1, %cst {dimension_numbers = #tpu.dot_dimension_numbers<[1], [0], [0], [1], [0, 0, 1, 1], [], []>} : vector<128x48xbf16>, vector<48x64xbf16>, vector<128x64xf32> -> vector<128x64xf32>
    %c0_3 = arith.constant 0 : index
    %c0_4 = arith.constant 0 : index
    %3 = vector.load %arg3[%c0_3, %c0_4] : memref<1x64xf32, #tpu.memory_space<vmem>>, vector<1x64xf32>
    %4 = vector.broadcast %3 : vector<1x64xf32> to vector<128x64xf32>
    %5 = arith.addf %2, %4 : vector<128x64xf32>
    %cst_5 = arith.constant 0.000000e+00 : f32
    %6 = vector.broadcast %cst_5 : f32 to vector<128x64xf32>
    %7 = arith.maximumf %5, %6 : vector<128x64xf32>
    %c0_6 = arith.constant 0 : index
    %c0_7 = arith.constant 0 : index
    %8 = vector.load %arg4[%c0_6, %c0_7] : memref<128x64xf32, #tpu.memory_space<vmem>>, vector<128x64xf32>
    tpu.vector_store %arg4[%c0_6, %c0_7], %7 {strides = array<i32>} : memref<128x64xf32, #tpu.memory_space<vmem>>, vector<128x64xf32>,
    return
  }
  func.func @transform_0(%arg0: i32) -> (i32, i32) {
    %c0_i32 = arith.constant 0 : i32
    %c0_i32_0 = arith.constant 0 : i32
    return %arg0, %c0_i32 : i32, i32
  }
  func.func @transform_1(%arg0: i32) -> (i32, i32) {
    %c0_i32 = arith.constant 0 : i32
    %c0_i32_0 = arith.constant 0 : i32
    %c0_i32_1 = arith.constant 0 : i32
    return %c0_i32, %c0_i32_0 : i32, i32
  }
  func.func @transform_2(%arg0: i32) -> (i32, i32) {
    %c0_i32 = arith.constant 0 : i32
    %c0_i32_0 = arith.constant 0 : i32
    %c0_i32_1 = arith.constant 0 : i32
    return %c0_i32, %c0_i32_0 : i32, i32
  }
  func.func @transform_3(%arg0: i32) -> (i32, i32) {
    %c0_i32 = arith.constant 0 : i32
    %c0_i32_0 = arith.constant 0 : i32
    return %arg0, %c0_i32 : i32, i32
  }
}

module attributes {stable_mosaic.version = 11 : i64} {
  func.func @_gemm_kernel(%arg0: i32, %arg1: memref<32x1024xbf16, #tpu.memory_space<vmem>>, %arg2: memref<1024x128xbf16, #tpu.memory_space<vmem>>, %arg3: memref<1x128xf32, #tpu.memory_space<vmem>>, %arg4: memref<32x128xf32, #tpu.memory_space<vmem>>) attributes {dimension_semantics = [#tpu.dimension_semantics<parallel>], iteration_bounds = array<i64: 1>, scalar_prefetch = 0 : i64, scratch_operands = 0 : i64, tpu.core_type = #tpu.core_type<tc>, window_params = [{transform_indices = @transform_0, window_bounds = array<i64: 32, 1024>}, {pipeline_mode = #tpu.pipeline_mode<synchronous>, transform_indices = @transform_1, window_bounds = array<i64: 1024, 128>}, {pipeline_mode = #tpu.pipeline_mode<synchronous>, transform_indices = @transform_2, window_bounds = array<i64: 1, 128>}, {transform_indices = @transform_3, window_bounds = array<i64: 32, 128>}]} {
    %c0 = arith.constant 0 : index
    %c0_0 = arith.constant 0 : index
    %0 = vector.load %arg1[%c0, %c0_0] : memref<32x1024xbf16, #tpu.memory_space<vmem>>, vector<32x1024xbf16>
    %c0_1 = arith.constant 0 : index
    %c0_2 = arith.constant 0 : index
    %1 = vector.load %arg2[%c0_1, %c0_2] : memref<1024x128xbf16, #tpu.memory_space<vmem>>, vector<1024x128xbf16>
    %cst = arith.constant dense<0.000000e+00> : vector<32x128xf32>
    %2 = tpu.matmul %0, %1, %cst {dimension_numbers = #tpu.dot_dimension_numbers<[1], [0], [0], [1], [0, 0, 1, 1], [], []>} : vector<32x1024xbf16>, vector<1024x128xbf16>, vector<32x128xf32> -> vector<32x128xf32>
    %c0_3 = arith.constant 0 : index
    %c0_4 = arith.constant 0 : index
    %3 = vector.load %arg3[%c0_3, %c0_4] : memref<1x128xf32, #tpu.memory_space<vmem>>, vector<1x128xf32>
    %4 = vector.broadcast %3 : vector<1x128xf32> to vector<32x128xf32>
    %5 = arith.addf %2, %4 : vector<32x128xf32>
    %cst_5 = arith.constant 0.000000e+00 : f32
    %6 = vector.broadcast %cst_5 : f32 to vector<32x128xf32>
    %7 = arith.maximumf %5, %6 : vector<32x128xf32>
    %c0_6 = arith.constant 0 : index
    %c0_7 = arith.constant 0 : index
    %8 = vector.load %arg4[%c0_6, %c0_7] : memref<32x128xf32, #tpu.memory_space<vmem>>, vector<32x128xf32>
    tpu.vector_store %arg4[%c0_6, %c0_7], %7 {strides = array<i32>} : memref<32x128xf32, #tpu.memory_space<vmem>>, vector<32x128xf32>,
    return
  }
  func.func @transform_0(%arg0: i32) -> (i32, i32) {
    %c0_i32 = arith.constant 0 : i32
    %c0_i32_0 = arith.constant 0 : i32
    return %arg0, %c0_i32 : i32, i32
  }
  func.func @transform_1(%arg0: i32) -> (i32, i32) {
    %c0_i32 = arith.constant 0 : i32
    %c0_i32_0 = arith.constant 0 : i32
    %c0_i32_1 = arith.constant 0 : i32
    return %c0_i32, %c0_i32_0 : i32, i32
  }
  func.func @transform_2(%arg0: i32) -> (i32, i32) {
    %c0_i32 = arith.constant 0 : i32
    %c0_i32_0 = arith.constant 0 : i32
    %c0_i32_1 = arith.constant 0 : i32
    return %c0_i32, %c0_i32_0 : i32, i32
  }
  func.func @transform_3(%arg0: i32) -> (i32, i32) {
    %c0_i32 = arith.constant 0 : i32
    %c0_i32_0 = arith.constant 0 : i32
    return %arg0, %c0_i32 : i32, i32
  }
}

module attributes {stable_mosaic.version = 11 : i64} {
  func.func @_gemm_kernel(%arg0: i32, %arg1: memref<32x1152xbf16, #tpu.memory_space<vmem>>, %arg2: memref<1152x128xbf16, #tpu.memory_space<vmem>>, %arg3: memref<32x128xf32, #tpu.memory_space<vmem>>) attributes {dimension_semantics = [#tpu.dimension_semantics<parallel>], iteration_bounds = array<i64: 1>, scalar_prefetch = 0 : i64, scratch_operands = 0 : i64, tpu.core_type = #tpu.core_type<tc>, window_params = [{transform_indices = @transform_0, window_bounds = array<i64: 32, 1152>}, {pipeline_mode = #tpu.pipeline_mode<synchronous>, transform_indices = @transform_1, window_bounds = array<i64: 1152, 128>}, {transform_indices = @transform_2, window_bounds = array<i64: 32, 128>}]} {
    %c0 = arith.constant 0 : index
    %c0_0 = arith.constant 0 : index
    %0 = vector.load %arg1[%c0, %c0_0] : memref<32x1152xbf16, #tpu.memory_space<vmem>>, vector<32x1152xbf16>
    %c0_1 = arith.constant 0 : index
    %c0_2 = arith.constant 0 : index
    %1 = vector.load %arg2[%c0_1, %c0_2] : memref<1152x128xbf16, #tpu.memory_space<vmem>>, vector<1152x128xbf16>
    %cst = arith.constant dense<0.000000e+00> : vector<32x128xf32>
    %2 = tpu.matmul %0, %1, %cst {dimension_numbers = #tpu.dot_dimension_numbers<[1], [0], [0], [1], [0, 0, 1, 1], [], []>} : vector<32x1152xbf16>, vector<1152x128xbf16>, vector<32x128xf32> -> vector<32x128xf32>
    %c0_3 = arith.constant 0 : index
    %c0_4 = arith.constant 0 : index
    %3 = vector.load %arg3[%c0_3, %c0_4] : memref<32x128xf32, #tpu.memory_space<vmem>>, vector<32x128xf32>
    tpu.vector_store %arg3[%c0_3, %c0_4], %2 {strides = array<i32>} : memref<32x128xf32, #tpu.memory_space<vmem>>, vector<32x128xf32>,
    return
  }
  func.func @transform_0(%arg0: i32) -> (i32, i32) {
    %c0_i32 = arith.constant 0 : i32
    %c0_i32_0 = arith.constant 0 : i32
    return %arg0, %c0_i32 : i32, i32
  }
  func.func @transform_1(%arg0: i32) -> (i32, i32) {
    %c0_i32 = arith.constant 0 : i32
    %c0_i32_0 = arith.constant 0 : i32
    %c0_i32_1 = arith.constant 0 : i32
    return %c0_i32, %c0_i32_0 : i32, i32
  }
  func.func @transform_2(%arg0: i32) -> (i32, i32) {
    %c0_i32 = arith.constant 0 : i32
    %c0_i32_0 = arith.constant 0 : i32
    return %arg0, %c0_i32 : i32, i32
  }
}

module attributes {stable_mosaic.version = 11 : i64} {
  func.func @_stats_kernel(%arg0: i32, %arg1: memref<32x128xf32, #tpu.memory_space<vmem>>, %arg2: memref<1x128xf32, #tpu.memory_space<vmem>>, %arg3: memref<1x128xf32, #tpu.memory_space<vmem>>) attributes {dimension_semantics = [#tpu.dimension_semantics<arbitrary>], iteration_bounds = array<i64: 1>, scalar_prefetch = 0 : i64, scratch_operands = 0 : i64, tpu.core_type = #tpu.core_type<tc>, window_params = [{transform_indices = @transform_0, window_bounds = array<i64: 32, 128>}, {pipeline_mode = #tpu.pipeline_mode<synchronous>, transform_indices = @transform_1, window_bounds = array<i64: 1, 128>}, {pipeline_mode = #tpu.pipeline_mode<synchronous>, transform_indices = @transform_2, window_bounds = array<i64: 1, 128>}]} {
    %c0_i32 = arith.constant 0 : i32
    %0 = arith.cmpi eq, %arg0, %c0_i32 : i32
    %1 = arith.extui %0 : i1 to i32
    %c0_i32_0 = arith.constant 0 : i32
    %2 = arith.cmpi ne, %1, %c0_i32_0 : i32
    scf.if %2 {
      %cst_11 = arith.constant 0.000000e+00 : f32
      %15 = vector.broadcast %cst_11 : f32 to vector<1x128xf32>
      %c0_12 = arith.constant 0 : index
      %c0_13 = arith.constant 0 : index
      %16 = vector.load %arg2[%c0_12, %c0_13] : memref<1x128xf32, #tpu.memory_space<vmem>>, vector<1x128xf32>
      tpu.vector_store %arg2[%c0_12, %c0_13], %15 {strides = array<i32>} : memref<1x128xf32, #tpu.memory_space<vmem>>, vector<1x128xf32>,
      %cst_14 = arith.constant 0.000000e+00 : f32
      %17 = vector.broadcast %cst_14 : f32 to vector<1x128xf32>
      %c0_15 = arith.constant 0 : index
      %c0_16 = arith.constant 0 : index
      %18 = vector.load %arg3[%c0_15, %c0_16] : memref<1x128xf32, #tpu.memory_space<vmem>>, vector<1x128xf32>
      tpu.vector_store %arg3[%c0_15, %c0_16], %17 {strides = array<i32>} : memref<1x128xf32, #tpu.memory_space<vmem>>, vector<1x128xf32>,
    } else {
    }
    %c0 = arith.constant 0 : index
    %c0_1 = arith.constant 0 : index
    %3 = vector.load %arg1[%c0, %c0_1] : memref<32x128xf32, #tpu.memory_space<vmem>>, vector<32x128xf32>
    %c0_2 = arith.constant 0 : index
    %c0_3 = arith.constant 0 : index
    %4 = vector.load %arg2[%c0_2, %c0_3] : memref<1x128xf32, #tpu.memory_space<vmem>>, vector<1x128xf32>
    %cst = arith.constant dense<0.000000e+00> : vector<128xf32>
    %5 = vector.multi_reduction <add>, %3, %cst [0] : vector<32x128xf32> to vector<128xf32>
    %6 = vector.shape_cast %5 : vector<128xf32> to vector<1x128xf32>
    %7 = arith.addf %4, %6 : vector<1x128xf32>
    %c0_4 = arith.constant 0 : index
    %c0_5 = arith.constant 0 : index
    %8 = vector.load %arg2[%c0_4, %c0_5] : memref<1x128xf32, #tpu.memory_space<vmem>>, vector<1x128xf32>
    tpu.vector_store %arg2[%c0_4, %c0_5], %7 {strides = array<i32>} : memref<1x128xf32, #tpu.memory_space<vmem>>, vector<1x128xf32>,
    %c0_6 = arith.constant 0 : index
    %c0_7 = arith.constant 0 : index
    %9 = vector.load %arg3[%c0_6, %c0_7] : memref<1x128xf32, #tpu.memory_space<vmem>>, vector<1x128xf32>
    %10 = arith.mulf %3, %3 : vector<32x128xf32>
    %cst_8 = arith.constant dense<0.000000e+00> : vector<128xf32>
    %11 = vector.multi_reduction <add>, %10, %cst_8 [0] : vector<32x128xf32> to vector<128xf32>
    %12 = vector.shape_cast %11 : vector<128xf32> to vector<1x128xf32>
    %13 = arith.addf %9, %12 : vector<1x128xf32>
    %c0_9 = arith.constant 0 : index
    %c0_10 = arith.constant 0 : index
    %14 = vector.load %arg3[%c0_9, %c0_10] : memref<1x128xf32, #tpu.memory_space<vmem>>, vector<1x128xf32>
    tpu.vector_store %arg3[%c0_9, %c0_10], %13 {strides = array<i32>} : memref<1x128xf32, #tpu.memory_space<vmem>>, vector<1x128xf32>,
    return
  }
  func.func @transform_0(%arg0: i32) -> (i32, i32) {
    %c0_i32 = arith.constant 0 : i32
    %c0_i32_0 = arith.constant 0 : i32
    return %arg0, %c0_i32 : i32, i32
  }
  func.func @transform_1(%arg0: i32) -> (i32, i32) {
    %c0_i32 = arith.constant 0 : i32
    %c0_i32_0 = arith.constant 0 : i32
    %c0_i32_1 = arith.constant 0 : i32
    return %c0_i32, %c0_i32_0 : i32, i32
  }
  func.func @transform_2(%arg0: i32) -> (i32, i32) {
    %c0_i32 = arith.constant 0 : i32
    %c0_i32_0 = arith.constant 0 : i32
    %c0_i32_1 = arith.constant 0 : i32
    return %c0_i32, %c0_i32_0 : i32, i32
  }
}

module attributes {stable_mosaic.version = 11 : i64} {
  func.func @_bn_apply_kernel(%arg0: i32, %arg1: memref<32x128xf32, #tpu.memory_space<vmem>>, %arg2: memref<1x128xf32, #tpu.memory_space<vmem>>, %arg3: memref<1x128xf32, #tpu.memory_space<vmem>>, %arg4: memref<32x128xf32, #tpu.memory_space<vmem>>, %arg5: memref<32x128xf32, #tpu.memory_space<vmem>>) attributes {dimension_semantics = [#tpu.dimension_semantics<parallel>], iteration_bounds = array<i64: 1>, scalar_prefetch = 0 : i64, scratch_operands = 0 : i64, tpu.core_type = #tpu.core_type<tc>, window_params = [{transform_indices = @transform_0, window_bounds = array<i64: 32, 128>}, {pipeline_mode = #tpu.pipeline_mode<synchronous>, transform_indices = @transform_1, window_bounds = array<i64: 1, 128>}, {pipeline_mode = #tpu.pipeline_mode<synchronous>, transform_indices = @transform_2, window_bounds = array<i64: 1, 128>}, {transform_indices = @transform_3, window_bounds = array<i64: 32, 128>}, {transform_indices = @transform_4, window_bounds = array<i64: 32, 128>}]} {
    %c0 = arith.constant 0 : index
    %c0_0 = arith.constant 0 : index
    %0 = vector.load %arg1[%c0, %c0_0] : memref<32x128xf32, #tpu.memory_space<vmem>>, vector<32x128xf32>
    %c0_1 = arith.constant 0 : index
    %c0_2 = arith.constant 0 : index
    %1 = vector.load %arg2[%c0_1, %c0_2] : memref<1x128xf32, #tpu.memory_space<vmem>>, vector<1x128xf32>
    %2 = vector.broadcast %1 : vector<1x128xf32> to vector<32x128xf32>
    %3 = arith.mulf %0, %2 : vector<32x128xf32>
    %c0_3 = arith.constant 0 : index
    %c0_4 = arith.constant 0 : index
    %4 = vector.load %arg3[%c0_3, %c0_4] : memref<1x128xf32, #tpu.memory_space<vmem>>, vector<1x128xf32>
    %5 = vector.broadcast %4 : vector<1x128xf32> to vector<32x128xf32>
    %6 = arith.addf %3, %5 : vector<32x128xf32>
    %c0_5 = arith.constant 0 : index
    %c0_6 = arith.constant 0 : index
    %7 = vector.load %arg4[%c0_5, %c0_6] : memref<32x128xf32, #tpu.memory_space<vmem>>, vector<32x128xf32>
    %8 = arith.addf %6, %7 : vector<32x128xf32>
    %cst = arith.constant 0.000000e+00 : f32
    %9 = vector.broadcast %cst : f32 to vector<32x128xf32>
    %10 = arith.maximumf %8, %9 : vector<32x128xf32>
    %c0_7 = arith.constant 0 : index
    %c0_8 = arith.constant 0 : index
    %11 = vector.load %arg5[%c0_7, %c0_8] : memref<32x128xf32, #tpu.memory_space<vmem>>, vector<32x128xf32>
    tpu.vector_store %arg5[%c0_7, %c0_8], %10 {strides = array<i32>} : memref<32x128xf32, #tpu.memory_space<vmem>>, vector<32x128xf32>,
    return
  }
  func.func @transform_0(%arg0: i32) -> (i32, i32) {
    %c0_i32 = arith.constant 0 : i32
    %c0_i32_0 = arith.constant 0 : i32
    return %arg0, %c0_i32 : i32, i32
  }
  func.func @transform_1(%arg0: i32) -> (i32, i32) {
    %c0_i32 = arith.constant 0 : i32
    %c0_i32_0 = arith.constant 0 : i32
    %c0_i32_1 = arith.constant 0 : i32
    return %c0_i32, %c0_i32_0 : i32, i32
  }
  func.func @transform_2(%arg0: i32) -> (i32, i32) {
    %c0_i32 = arith.constant 0 : i32
    %c0_i32_0 = arith.constant 0 : i32
    %c0_i32_1 = arith.constant 0 : i32
    return %c0_i32, %c0_i32_0 : i32, i32
  }
  func.func @transform_3(%arg0: i32) -> (i32, i32) {
    %c0_i32 = arith.constant 0 : i32
    %c0_i32_0 = arith.constant 0 : i32
    return %arg0, %c0_i32 : i32, i32
  }
  func.func @transform_4(%arg0: i32) -> (i32, i32) {
    %c0_i32 = arith.constant 0 : i32
    %c0_i32_0 = arith.constant 0 : i32
    return %arg0, %c0_i32 : i32, i32
  }
}

module attributes {stable_mosaic.version = 11 : i64} {
  func.func @_bn_apply_kernel(%arg0: i32, %arg1: memref<32x128xf32, #tpu.memory_space<vmem>>, %arg2: memref<1x128xf32, #tpu.memory_space<vmem>>, %arg3: memref<1x128xf32, #tpu.memory_space<vmem>>, %arg4: memref<32x128xf32, #tpu.memory_space<vmem>>) attributes {dimension_semantics = [#tpu.dimension_semantics<parallel>], iteration_bounds = array<i64: 1>, scalar_prefetch = 0 : i64, scratch_operands = 0 : i64, tpu.core_type = #tpu.core_type<tc>, window_params = [{transform_indices = @transform_0, window_bounds = array<i64: 32, 128>}, {pipeline_mode = #tpu.pipeline_mode<synchronous>, transform_indices = @transform_1, window_bounds = array<i64: 1, 128>}, {pipeline_mode = #tpu.pipeline_mode<synchronous>, transform_indices = @transform_2, window_bounds = array<i64: 1, 128>}, {transform_indices = @transform_3, window_bounds = array<i64: 32, 128>}]} {
    %c0 = arith.constant 0 : index
    %c0_0 = arith.constant 0 : index
    %0 = vector.load %arg1[%c0, %c0_0] : memref<32x128xf32, #tpu.memory_space<vmem>>, vector<32x128xf32>
    %c0_1 = arith.constant 0 : index
    %c0_2 = arith.constant 0 : index
    %1 = vector.load %arg2[%c0_1, %c0_2] : memref<1x128xf32, #tpu.memory_space<vmem>>, vector<1x128xf32>
    %2 = vector.broadcast %1 : vector<1x128xf32> to vector<32x128xf32>
    %3 = arith.mulf %0, %2 : vector<32x128xf32>
    %c0_3 = arith.constant 0 : index
    %c0_4 = arith.constant 0 : index
    %4 = vector.load %arg3[%c0_3, %c0_4] : memref<1x128xf32, #tpu.memory_space<vmem>>, vector<1x128xf32>
    %5 = vector.broadcast %4 : vector<1x128xf32> to vector<32x128xf32>
    %6 = arith.addf %3, %5 : vector<32x128xf32>
    %cst = arith.constant 0.000000e+00 : f32
    %7 = vector.broadcast %cst : f32 to vector<32x128xf32>
    %8 = arith.maximumf %6, %7 : vector<32x128xf32>
    %c0_5 = arith.constant 0 : index
    %c0_6 = arith.constant 0 : index
    %9 = vector.load %arg4[%c0_5, %c0_6] : memref<32x128xf32, #tpu.memory_space<vmem>>, vector<32x128xf32>
    tpu.vector_store %arg4[%c0_5, %c0_6], %8 {strides = array<i32>} : memref<32x128xf32, #tpu.memory_space<vmem>>, vector<32x128xf32>,
    return
  }
  func.func @transform_0(%arg0: i32) -> (i32, i32) {
    %c0_i32 = arith.constant 0 : i32
    %c0_i32_0 = arith.constant 0 : i32
    return %arg0, %c0_i32 : i32, i32
  }
  func.func @transform_1(%arg0: i32) -> (i32, i32) {
    %c0_i32 = arith.constant 0 : i32
    %c0_i32_0 = arith.constant 0 : i32
    %c0_i32_1 = arith.constant 0 : i32
    return %c0_i32, %c0_i32_0 : i32, i32
  }
  func.func @transform_2(%arg0: i32) -> (i32, i32) {
    %c0_i32 = arith.constant 0 : i32
    %c0_i32_0 = arith.constant 0 : i32
    %c0_i32_1 = arith.constant 0 : i32
    return %c0_i32, %c0_i32_0 : i32, i32
  }
  func.func @transform_3(%arg0: i32) -> (i32, i32) {
    %c0_i32 = arith.constant 0 : i32
    %c0_i32_0 = arith.constant 0 : i32
    return %arg0, %c0_i32 : i32, i32
  }
}

module attributes {stable_mosaic.version = 11 : i64} {
  func.func @_gemm_kernel(%arg0: i32, %arg1: memref<32x128xbf16, #tpu.memory_space<vmem>>, %arg2: memref<128x128xbf16, #tpu.memory_space<vmem>>, %arg3: memref<1x128xf32, #tpu.memory_space<vmem>>, %arg4: memref<32x128xf32, #tpu.memory_space<vmem>>) attributes {dimension_semantics = [#tpu.dimension_semantics<parallel>], iteration_bounds = array<i64: 1>, scalar_prefetch = 0 : i64, scratch_operands = 0 : i64, tpu.core_type = #tpu.core_type<tc>, window_params = [{transform_indices = @transform_0, window_bounds = array<i64: 32, 128>}, {pipeline_mode = #tpu.pipeline_mode<synchronous>, transform_indices = @transform_1, window_bounds = array<i64: 128, 128>}, {pipeline_mode = #tpu.pipeline_mode<synchronous>, transform_indices = @transform_2, window_bounds = array<i64: 1, 128>}, {transform_indices = @transform_3, window_bounds = array<i64: 32, 128>}]} {
    %c0 = arith.constant 0 : index
    %c0_0 = arith.constant 0 : index
    %0 = vector.load %arg1[%c0, %c0_0] : memref<32x128xbf16, #tpu.memory_space<vmem>>, vector<32x128xbf16>
    %c0_1 = arith.constant 0 : index
    %c0_2 = arith.constant 0 : index
    %1 = vector.load %arg2[%c0_1, %c0_2] : memref<128x128xbf16, #tpu.memory_space<vmem>>, vector<128x128xbf16>
    %cst = arith.constant dense<0.000000e+00> : vector<32x128xf32>
    %2 = tpu.matmul %0, %1, %cst {dimension_numbers = #tpu.dot_dimension_numbers<[1], [0], [0], [1], [0, 0, 1, 1], [], []>} : vector<32x128xbf16>, vector<128x128xbf16>, vector<32x128xf32> -> vector<32x128xf32>
    %c0_3 = arith.constant 0 : index
    %c0_4 = arith.constant 0 : index
    %3 = vector.load %arg3[%c0_3, %c0_4] : memref<1x128xf32, #tpu.memory_space<vmem>>, vector<1x128xf32>
    %4 = vector.broadcast %3 : vector<1x128xf32> to vector<32x128xf32>
    %5 = arith.addf %2, %4 : vector<32x128xf32>
    %c0_5 = arith.constant 0 : index
    %c0_6 = arith.constant 0 : index
    %6 = vector.load %arg4[%c0_5, %c0_6] : memref<32x128xf32, #tpu.memory_space<vmem>>, vector<32x128xf32>
    tpu.vector_store %arg4[%c0_5, %c0_6], %5 {strides = array<i32>} : memref<32x128xf32, #tpu.memory_space<vmem>>, vector<32x128xf32>,
    return
  }
  func.func @transform_0(%arg0: i32) -> (i32, i32) {
    %c0_i32 = arith.constant 0 : i32
    %c0_i32_0 = arith.constant 0 : i32
    return %arg0, %c0_i32 : i32, i32
  }
  func.func @transform_1(%arg0: i32) -> (i32, i32) {
    %c0_i32 = arith.constant 0 : i32
    %c0_i32_0 = arith.constant 0 : i32
    %c0_i32_1 = arith.constant 0 : i32
    return %c0_i32, %c0_i32_0 : i32, i32
  }
  func.func @transform_2(%arg0: i32) -> (i32, i32) {
    %c0_i32 = arith.constant 0 : i32
    %c0_i32_0 = arith.constant 0 : i32
    %c0_i32_1 = arith.constant 0 : i32
    return %c0_i32, %c0_i32_0 : i32, i32
  }
  func.func @transform_3(%arg0: i32) -> (i32, i32) {
    %c0_i32 = arith.constant 0 : i32
    %c0_i32_0 = arith.constant 0 : i32
    return %arg0, %c0_i32 : i32, i32
  }
}

</mosaic_0001>

<llo_original>
// kernel: semantic_learner_forward.33
$region0: #{semantic_learner_forward.33}
  #allocation0 [shape = 'u32[]', space=smem, size = 0x4, offset = 0x4, fixed_abs, tag = 'smem constant byte address 0x4 - core index']
  #allocation1 [shape = 'u32[144,128]{1,0:T(1,128)}', space=vmem, size = 0x12000, scoped, tag = 'internal scratch']
  %s0 = inlined_call_operand.vmem [shape: bf16[128,48], index: 0, kind: input, shape index: {}]
  %s1 = inlined_call_operand.vmem [shape: bf16[48,64], index: 1, kind: input, shape index: {}]
  %s2 = inlined_call_operand.vmem [shape: f32[1,64], index: 2, kind: input, shape index: {}]
  %s3 = inlined_call_operand.vmem [shape: f32[128,64], index: 3, kind: output, shape index: {}]
  %s4 = sld [smem:[#allocation0]]
  $region22: #{semantic_learner_forward.33} parent=0
    _
  %s6 = ssub.s32 1, %s4
  %s7 = scalar_select 0, %s6, %s4
  // Predicated region
  $region2: #{semantic_learner_forward.33} parent=0 // pred_check
    _
  $region3: #{semantic_learner_forward.33} parent=0 // pred_check_branch
    %9 = sbr.rel (0) target = $region5
  $region4: #{semantic_learner_forward.33} parent=0 // pred_region
    _
  $region5: #{semantic_learner_forward.33} parent=0 // pred_fallthru
    _
  // Predicated region
  $region6: #{semantic_learner_forward.33} parent=0 // pred_check
    _
  $region7: #{semantic_learner_forward.33} parent=0 // pred_check_branch
    %11 = sbr.rel (0) target = $region9
  $region8: #{semantic_learner_forward.33} parent=0 // pred_region
    _
  $region9: #{semantic_learner_forward.33} parent=0 // pred_fallthru
    _
  // Predicated region
  $region10: #{semantic_learner_forward.33} parent=0 // pred_check
    _
  $region11: #{semantic_learner_forward.33} parent=0 // pred_check_branch
    %13 = sbr.rel (0) target = $region13
  $region12: #{semantic_learner_forward.33} parent=0 // pred_region
    _
  $region13: #{semantic_learner_forward.33} parent=0 // pred_fallthru
    _
  %v15 = vld [vmem:[%s0] sm:$0xf]
  %v16 = vld [vmem:[%s0 + $0x4] sm:$0xf]
  %v17 = vld [vmem:[%s0 + $0x8] sm:$0xf]
  %v18 = vld [vmem:[%s0 + $0xc] sm:$0xf]
  %v19 = vld [vmem:[%s0 + $0x10] sm:$0xf]
  %v20 = vld [vmem:[%s0 + $0x14] sm:$0xf]
  %v21 = vld [vmem:[%s0 + $0x18] sm:$0xf]
  %v22 = vld [vmem:[%s0 + $0x1c] sm:$0xf]
  %v23 = vld [vmem:[%s0 + $0x20] sm:$0xf]
  %v24 = vld [vmem:[%s0 + $0x24] sm:$0xf]
  %v25 = vld [vmem:[%s0 + $0x28] sm:$0xf]
  %v26 = vld [vmem:[%s0 + $0x2c] sm:$0xf]
  %v27 = vld [vmem:[%s0 + $0x30] sm:$0xf]
  %v28 = vld [vmem:[%s0 + $0x34] sm:$0xf]
  %v29 = vld [vmem:[%s0 + $0x38] sm:$0xf]
  %v30 = vld [vmem:[%s0 + $0x3c] sm:$0xf]
  %v31 = vld [vmem:[%s1] sm:$0xf]
  %v32 = vld [vmem:[%s1 + $0x4] sm:$0xf]
  %v33 = vld [vmem:[%s1 + $0x8] sm:$0xf]
  %v34 = vld [vmem:[%s1 + $0xc] sm:$0xf]
  %v35 = vld [vmem:[%s1 + $0x10] sm:$0xf]
  %v36 = vld [vmem:[%s1 + $0x14] sm:$0xf]
  %v37 = vld [vmem:[%s2] sm:$0x1]
  %v39 = vlaneseq
  %v40 = vshrl.u32 %v39, 7
  %v41 = vsub.s32 0, %v40
  %v42 = vrot.slane %v37, %v41
  %v60 = vunpack.c.l.b16 %v15
  %v61 = vunpack.c.l.b16 %v16
  %v62 = vunpack.c.l.b16 %v17
  %v63 = vunpack.c.l.b16 %v18
  %v64 = vunpack.c.l.b16 %v19
  %v65 = vunpack.c.l.b16 %v20
  %v66 = vunpack.c.l.b16 %v21
  %v67 = vunpack.c.l.b16 %v22
  %v68 = vunpack.c.l.b16 %v23
  %v69 = vunpack.c.l.b16 %v24
  %v70 = vunpack.c.l.b16 %v25
  %v71 = vunpack.c.l.b16 %v26
  %v72 = vunpack.c.l.b16 %v27
  %v73 = vunpack.c.l.b16 %v28
  %v74 = vunpack.c.l.b16 %v29
  %v75 = vunpack.c.l.b16 %v30
  %v76 = vpack.c.b16 %v61, %v60
  %v77 = vpack.c.b16 %v63, %v62
  %v78 = vpack.c.b16 %v65, %v64
  %v79 = vpack.c.b16 %v67, %v66
  %v80 = vpack.c.b16 %v69, %v68
  %v81 = vpack.c.b16 %v71, %v70
  %v82 = vpack.c.b16 %v73, %v72
  %v83 = vpack.c.b16 %v75, %v74
  %v90 = vunpack.c.l.b16 %v31
  %v91 = vunpack.c.l.b16 %v32
  %v92 = vunpack.c.l.b16 %v33
  %v93 = vunpack.c.l.b16 %v34
  %v94 = vunpack.c.l.b16 %v35
  %v95 = vunpack.c.l.b16 %v36
  %v96 = vpack.c.b16 %v91, %v90
  %v97 = vpack.c.b16 %v93, %v92
  %v98 = vpack.c.b16 %v95, %v94
  %vm102 = vcmask 392192
  %v104 = vsel %vm102, %v76, 0
  %v107 = vsel %vm102, %v77, 0
  %v110 = vsel %vm102, %v78, 0
  %v113 = vsel %vm102, %v79, 0
  %v116 = vsel %vm102, %v80, 0
  %v119 = vsel %vm102, %v81, 0
  %v122 = vsel %vm102, %v82, 0
  %v125 = vsel %vm102, %v83, 0
  %127 = vmatprep.subr.bf16.mxu0 0
  %128 = vmatpush1.bf16.msra.mxu0 %v96
  %129 = vmatprep.subr.bf16.mxu0 0
  %130 = vmatpush1.bf16.msra.mxu0 %v97
  %131 = vmatprep.subr.bf16.mxu0 0
  %132 = vmatpush1.bf16.msra.mxu0 %v98
  %133 = vmatprep.subr.bf16.mxu0 0
  %134 = vmatpush1.bf16.msra.mxu0 0
  %135 = vmatprep.subr.bf16.mxu0 0
  %136 = vmatpush1.bf16.msra.mxu0 0
  %137 = vmatprep.subr.bf16.mxu0 0
  %138 = vmatpush1.bf16.msra.mxu0 0
  %139 = vmatprep.subr.bf16.mxu0 0
  %140 = vmatpush1.bf16.msra.mxu0 0
  %141 = vmatprep.subr.bf16.mxu0 0
  %142 = vmatpush1.bf16.msra.mxu0 0
  %143 = vmatprep.subr.bf16.mxu0 0
  %144 = vmatpush1.bf16.msra.mxu0 0
  %145 = vmatprep.subr.bf16.mxu0 0
  %146 = vmatpush1.bf16.msra.mxu0 0
  %147 = vmatprep.subr.bf16.mxu0 0
  %148 = vmatpush1.bf16.msra.mxu0 0
  %149 = vmatprep.subr.bf16.mxu0 0
  %150 = vmatpush1.bf16.msra.mxu0 0
  %151 = vmatprep.subr.bf16.mxu0 0
  %152 = vmatpush1.bf16.msra.mxu0 0
  %153 = vmatprep.subr.bf16.mxu0 0
  %154 = vmatpush1.bf16.msra.mxu0 0
  %155 = vmatprep.subr.bf16.mxu0 0
  %156 = vmatpush1.bf16.msra.mxu0 0
  %157 = vmatprep.subr.bf16.mxu0 0
  %158 = vmatpush1.bf16.msra.mxu0 0
  %159 = vmatprep.mubr.bf16.mxu0 0
  %160 = vmatmul.mubr.bf16.gmra.mrb[0].mxu0 %v104
  %v161 = vpop.f32.mrb[0].mxu0
  %v162 = vadd.f32 %v42, %v161
  %v163 = vpop.f32.mrb[0].mxu0
  %v164 = vpop.f32.mrb[0].mxu0
  %v165 = vadd.f32 %v42, %v164
  %v166 = vpop.f32.mrb[0].mxu0
  %167 = vmatprep.mubr.bf16.mxu0 0
  %168 = vmatmul.mubr.bf16.gmra.mrb[0].mxu0 %v107
  %v169 = vpop.f32.mrb[0].mxu0
  %v170 = vadd.f32 %v42, %v169
  %v171 = vpop.f32.mrb[0].mxu0
  %v172 = vpop.f32.mrb[0].mxu0
  %v173 = vadd.f32 %v42, %v172
  %v174 = vpop.f32.mrb[0].mxu0
  %175 = vmatprep.mubr.bf16.mxu0 0
  %176 = vmatmul.mubr.bf16.gmra.mrb[0].mxu0 %v110
  %v177 = vpop.f32.mrb[0].mxu0
  %v178 = vadd.f32 %v42, %v177
  %v179 = vpop.f32.mrb[0].mxu0
  %v180 = vpop.f32.mrb[0].mxu0
  %v181 = vadd.f32 %v42, %v180
  %v182 = vpop.f32.mrb[0].mxu0
  %183 = vmatprep.mubr.bf16.mxu0 0
  %184 = vmatmul.mubr.bf16.gmra.mrb[0].mxu0 %v113
  %v185 = vpop.f32.mrb[0].mxu0
  %v186 = vadd.f32 %v42, %v185
  %v187 = vpop.f32.mrb[0].mxu0
  %v188 = vpop.f32.mrb[0].mxu0
  %v189 = vadd.f32 %v42, %v188
  %v190 = vpop.f32.mrb[0].mxu0
  %191 = vmatprep.mubr.bf16.mxu0 0
  %192 = vmatmul.mubr.bf16.gmra.mrb[0].mxu0 %v116
  %v193 = vpop.f32.mrb[0].mxu0
  %v194 = vadd.f32 %v42, %v193
  %v195 = vpop.f32.mrb[0].mxu0
  %v196 = vpop.f32.mrb[0].mxu0
  %v197 = vadd.f32 %v42, %v196
  %v198 = vpop.f32.mrb[0].mxu0
  %199 = vmatprep.mubr.bf16.mxu0 0
  %200 = vmatmul.mubr.bf16.gmra.mrb[0].mxu0 %v119
  %v201 = vpop.f32.mrb[0].mxu0
  %v202 = vadd.f32 %v42, %v201
  %v203 = vpop.f32.mrb[0].mxu0
  %v204 = vpop.f32.mrb[0].mxu0
  %v205 = vadd.f32 %v42, %v204
  %v206 = vpop.f32.mrb[0].mxu0
  %207 = vmatprep.mubr.bf16.mxu0 0
  %208 = vmatmul.mubr.bf16.gmra.mrb[0].mxu0 %v122
  %v209 = vpop.f32.mrb[0].mxu0
  %v210 = vadd.f32 %v42, %v209
  %v211 = vpop.f32.mrb[0].mxu0
  %v212 = vpop.f32.mrb[0].mxu0
  %v213 = vadd.f32 %v42, %v212
  %v214 = vpop.f32.mrb[0].mxu0
  %215 = vmatprep.mubr.bf16.mxu0 0
  %216 = vmatmul.mubr.bf16.gmra.mrb[0].mxu0 %v125
  %v217 = vpop.f32.mrb[0].mxu0
  %v218 = vadd.f32 %v42, %v217
  %v219 = vpop.f32.mrb[0].mxu0
  %v220 = vpop.f32.mrb[0].mxu0
  %v221 = vadd.f32 %v42, %v220
  %v222 = vpop.f32.mrb[0].mxu0
  %223 = vdwg.mxu0
  %v224 = vmax.f32 %v162, 0.0
  %v225 = vmax.f32 %v165, 0.0
  %v226 = vmax.f32 %v170, 0.0
  %v227 = vmax.f32 %v173, 0.0
  %v228 = vmax.f32 %v178, 0.0
  %v229 = vmax.f32 %v181, 0.0
  %v230 = vmax.f32 %v186, 0.0
  %v231 = vmax.f32 %v189, 0.0
  %v232 = vmax.f32 %v194, 0.0
  %v233 = vmax.f32 %v197, 0.0
  %v234 = vmax.f32 %v202, 0.0
  %v235 = vmax.f32 %v205, 0.0
  %v236 = vmax.f32 %v210, 0.0
  %v237 = vmax.f32 %v213, 0.0
  %v238 = vmax.f32 %v218, 0.0
  %v239 = vmax.f32 %v221, 0.0
  %vm240 = vcmask 523264
  %241 = vst.msk [vmem:[%s3] sm:$0xff] %vm240, %v224
  %242 = vst.msk [vmem:[%s3 + $0x8] sm:$0xff] %vm240, %v225
  %243 = vst.msk [vmem:[%s3 + $0x10] sm:$0xff] %vm240, %v226
  %244 = vst.msk [vmem:[%s3 + $0x18] sm:$0xff] %vm240, %v227
  %245 = vst.msk [vmem:[%s3 + $0x20] sm:$0xff] %vm240, %v228
  %246 = vst.msk [vmem:[%s3 + $0x28] sm:$0xff] %vm240, %v229
  %247 = vst.msk [vmem:[%s3 + $0x30] sm:$0xff] %vm240, %v230
  %248 = vst.msk [vmem:[%s3 + $0x38] sm:$0xff] %vm240, %v231
  %249 = vst.msk [vmem:[%s3 + $0x40] sm:$0xff] %vm240, %v232
  %250 = vst.msk [vmem:[%s3 + $0x48] sm:$0xff] %vm240, %v233
  %251 = vst.msk [vmem:[%s3 + $0x50] sm:$0xff] %vm240, %v234
  %252 = vst.msk [vmem:[%s3 + $0x58] sm:$0xff] %vm240, %v235
  %253 = vst.msk [vmem:[%s3 + $0x60] sm:$0xff] %vm240, %v236
  %254 = vst.msk [vmem:[%s3 + $0x68] sm:$0xff] %vm240, %v237
  %255 = vst.msk [vmem:[%s3 + $0x70] sm:$0xff] %vm240, %v238
  %256 = vst.msk [vmem:[%s3 + $0x78] sm:$0xff] %vm240, %v239
  // Predicated region
  $region14: #{semantic_learner_forward.33} parent=0 // pred_check
    _
  $region15: #{semantic_learner_forward.33} parent=0 // pred_check_branch
    %258 = sbr.rel (0) target = $region17
  $region16: #{semantic_learner_forward.33} parent=0 // pred_region
    _
  $region17: #{semantic_learner_forward.33} parent=0 // pred_fallthru
    _
  // Predicated region
  $region18: #{semantic_learner_forward.33} parent=0 // pred_check
    _
  $region19: #{semantic_learner_forward.33} parent=0 // pred_check_branch
    %260 = sbr.rel (0) target = $region21
  $region20: #{semantic_learner_forward.33} parent=0 // pred_region
    _
  $region21: #{semantic_learner_forward.33} parent=0 // pred_fallthru
    _

// kernel: semantic_learner_forward.34
$region0: #{semantic_learner_forward.34}
  #allocation0 [shape = 'u32[]', space=smem, size = 0x4, offset = 0x4, fixed_abs, tag = 'smem constant byte address 0x4 - core index']
  #allocation1 [shape = 'u32[144,128]{1,0:T(1,128)}', space=vmem, size = 0x12000, scoped, tag = 'internal scratch']
  %s0 = inlined_call_operand.vmem [shape: bf16[32,1024], index: 0, kind: input, shape index: {}]
  %s1 = inlined_call_operand.vmem [shape: bf16[1024,128], index: 1, kind: input, shape index: {}]
  %s2 = inlined_call_operand.vmem [shape: f32[1,128], index: 2, kind: input, shape index: {}]
  %s3 = inlined_call_operand.vmem [shape: f32[32,128], index: 3, kind: output, shape index: {}]
  %s4 = sld [smem:[#allocation0]]
  $region22: #{semantic_learner_forward.34} parent=0
    _
  %s6 = ssub.s32 1, %s4
  %s7 = scalar_select 0, %s6, %s4
  // Predicated region
  $region2: #{semantic_learner_forward.34} parent=0 // pred_check
    _
  $region3: #{semantic_learner_forward.34} parent=0 // pred_check_branch
    %9 = sbr.rel (0) target = $region5
  $region4: #{semantic_learner_forward.34} parent=0 // pred_region
    _
  $region5: #{semantic_learner_forward.34} parent=0 // pred_fallthru
    _
  // Predicated region
  $region6: #{semantic_learner_forward.34} parent=0 // pred_check
    _
  $region7: #{semantic_learner_forward.34} parent=0 // pred_check_branch
    %11 = sbr.rel (0) target = $region9
  $region8: #{semantic_learner_forward.34} parent=0 // pred_region
    _
  $region9: #{semantic_learner_forward.34} parent=0 // pred_fallthru
    _
  // Predicated region
  $region10: #{semantic_learner_forward.34} parent=0 // pred_check
    _
  $region11: #{semantic_learner_forward.34} parent=0 // pred_check_branch
    %13 = sbr.rel (0) target = $region13
  $region12: #{semantic_learner_forward.34} parent=0 // pred_region
    _
  $region13: #{semantic_learner_forward.34} parent=0 // pred_fallthru
    _
  %v15 = vld [vmem:[%s0] sm:$0xff]
  %v16 = vld [vmem:[%s0 + $0x8] sm:$0xff]
  %v17 = vld [vmem:[%s0 + $0x10] sm:$0xff]
  %v18 = vld [vmem:[%s0 + $0x18] sm:$0xff]
  %v19 = vld [vmem:[%s0 + $0x20] sm:$0xff]
  %v20 = vld [vmem:[%s0 + $0x28] sm:$0xff]
  %v21 = vld [vmem:[%s0 + $0x30] sm:$0xff]
  %v22 = vld [vmem:[%s0 + $0x38] sm:$0xff]
  %v23 = vld [vmem:[%s0 + $0x40] sm:$0xff]
  %v24 = vld [vmem:[%s0 + $0x48] sm:$0xff]
  %v25 = vld [vmem:[%s0 + $0x50] sm:$0xff]
  %v26 = vld [vmem:[%s0 + $0x58] sm:$0xff]
  %v27 = vld [vmem:[%s0 + $0x60] sm:$0xff]
  %v28 = vld [vmem:[%s0 + $0x68] sm:$0xff]
  %v29 = vld [vmem:[%s0 + $0x70] sm:$0xff]
  %v30 = vld [vmem:[%s0 + $0x78] sm:$0xff]
  %v31 = vld [vmem:[%s1] sm:$0xf]
  %v32 = vld [vmem:[%s1 + $0x4] sm:$0xf]
  %v33 = vld [vmem:[%s1 + $0x8] sm:$0xf]
  %v34 = vld [vmem:[%s1 + $0xc] sm:$0xf]
  %v35 = vld [vmem:[%s1 + $0x10] sm:$0xf]
  %v36 = vld [vmem:[%s1 + $0x14] sm:$0xf]
  %v37 = vld [vmem:[%s1 + $0x18] sm:$0xf]
  %v38 = vld [vmem:[%s1 + $0x1c] sm:$0xf]
  %v39 = vld [vmem:[%s1 + $0x20] sm:$0xf]
  %v40 = vld [vmem:[%s1 + $0x24] sm:$0xf]
  %v41 = vld [vmem:[%s1 + $0x28] sm:$0xf]
  %v42 = vld [vmem:[%s1 + $0x2c] sm:$0xf]
  %v43 = vld [vmem:[%s1 + $0x30] sm:$0xf]
  %v44 = vld [vmem:[%s1 + $0x34] sm:$0xf]
  %v45 = vld [vmem:[%s1 + $0x38] sm:$0xf]
  %v46 = vld [vmem:[%s1 + $0x3c] sm:$0xf]
  %v47 = vld [vmem:[%s1 + $0x40] sm:$0xf]
  %v48 = vld [vmem:[%s1 + $0x44] sm:$0xf]
  %v49 = vld [vmem:[%s1 + $0x48] sm:$0xf]
  %v50 = vld [vmem:[%s1 + $0x4c] sm:$0xf]
  %v51 = vld [vmem:[%s1 + $0x50] sm:$0xf]
  %v52 = vld [vmem:[%s1 + $0x54] sm:$0xf]
  %v53 = vld [vmem:[%s1 + $0x58] sm:$0xf]
  %v54 = vld [vmem:[%s1 + $0x5c] sm:$0xf]
  %v55 = vld [vmem:[%s1 + $0x60] sm:$0xf]
  %v56 = vld [vmem:[%s1 + $0x64] sm:$0xf]
  %v57 = vld [vmem:[%s1 + $0x68] sm:$0xf]
  %v58 = vld [vmem:[%s1 + $0x6c] sm:$0xf]
  %v59 = vld [vmem:[%s1 + $0x70] sm:$0xf]
  %v60 = vld [vmem:[%s1 + $0x74] sm:$0xf]
  %v61 = vld [vmem:[%s1 + $0x78] sm:$0xf]
  %v62 = vld [vmem:[%s1 + $0x7c] sm:$0xf]
  %v63 = vld [vmem:[%s1 + $0x80] sm:$0xf]
  %v64 = vld [vmem:[%s1 + $0x84] sm:$0xf]
  %v65 = vld [vmem:[%s1 + $0x88] sm:$0xf]
  %v66 = vld [vmem:[%s1 + $0x8c] sm:$0xf]
  %v67 = vld [vmem:[%s1 + $0x90] sm:$0xf]
  %v68 = vld [vmem:[%s1 + $0x94] sm:$0xf]
  %v69 = vld [vmem:[%s1 + $0x98] sm:$0xf]
  %v70 = vld [vmem:[%s1 + $0x9c] sm:$0xf]
  %v71 = vld [vmem:[%s1 + $0xa0] sm:$0xf]
  %v72 = vld [vmem:[%s1 + $0xa4] sm:$0xf]
  %v73 = vld [vmem:[%s1 + $0xa8] sm:$0xf]
  %v74 = vld [vmem:[%s1 + $0xac] sm:$0xf]
  %v75 = vld [vmem:[%s1 + $0xb0] sm:$0xf]
  %v76 = vld [vmem:[%s1 + $0xb4] sm:$0xf]
  %v77 = vld [vmem:[%s1 + $0xb8] sm:$0xf]
  %v78 = vld [vmem:[%s1 + $0xbc] sm:$0xf]
  %v79 = vld [vmem:[%s1 + $0xc0] sm:$0xf]
  %v80 = vld [vmem:[%s1 + $0xc4] sm:$0xf]
  %v81 = vld [vmem:[%s1 + $0xc8] sm:$0xf]
  %v82 = vld [vmem:[%s1 + $0xcc] sm:$0xf]
  %v83 = vld [vmem:[%s1 + $0xd0] sm:$0xf]
  %v84 = vld [vmem:[%s1 + $0xd4] sm:$0xf]
  %v85 = vld [vmem:[%s1 + $0xd8] sm:$0xf]
  %v86 = vld [vmem:[%s1 + $0xdc] sm:$0xf]
  %v87 = vld [vmem:[%s1 + $0xe0] sm:$0xf]
  %v88 = vld [vmem:[%s1 + $0xe4] sm:$0xf]
  %v89 = vld [vmem:[%s1 + $0xe8] sm:$0xf]
  %v90 = vld [vmem:[%s1 + $0xec] sm:$0xf]
  %v91 = vld [vmem:[%s1 + $0xf0] sm:$0xf]
  %v92 = vld [vmem:[%s1 + $0xf4] sm:$0xf]
  %v93 = vld [vmem:[%s1 + $0xf8] sm:$0xf]
  %v94 = vld [vmem:[%s1 + $0xfc] sm:$0xf]
  %v95 = vld [vmem:[%s1 + $0x100] sm:$0xf]
  %v96 = vld [vmem:[%s1 + $0x104] sm:$0xf]
  %v97 = vld [vmem:[%s1 + $0x108] sm:$0xf]
  %v98 = vld [vmem:[%s1 + $0x10c] sm:$0xf]
  %v99 = vld [vmem:[%s1 + $0x110] sm:$0xf]
  %v100 = vld [vmem:[%s1 + $0x114] sm:$0xf]
  %v101 = vld [vmem:[%s1 + $0x118] sm:$0xf]
  %v102 = vld [vmem:[%s1 + $0x11c] sm:$0xf]
  %v103 = vld [vmem:[%s1 + $0x120] sm:$0xf]
  %v104 = vld [vmem:[%s1 + $0x124] sm:$0xf]
  %v105 = vld [vmem:[%s1 + $0x128] sm:$0xf]
  %v106 = vld [vmem:[%s1 + $0x12c] sm:$0xf]
  %v107 = vld [vmem:[%s1 + $0x130] sm:$0xf]
  %v108 = vld [vmem:[%s1 + $0x134] sm:$0xf]
  %v109 = vld [vmem:[%s1 + $0x138] sm:$0xf]
  %v110 = vld [vmem:[%s1 + $0x13c] sm:$0xf]
  %v111 = vld [vmem:[%s1 + $0x140] sm:$0xf]
  %v112 = vld [vmem:[%s1 + $0x144] sm:$0xf]
  %v113 = vld [vmem:[%s1 + $0x148] sm:$0xf]
  %v114 = vld [vmem:[%s1 + $0x14c] sm:$0xf]
  %v115 = vld [vmem:[%s1 + $0x150] sm:$0xf]
  %v116 = vld [vmem:[%s1 + $0x154] sm:$0xf]
  %v117 = vld [vmem:[%s1 + $0x158] sm:$0xf]
  %v118 = vld [vmem:[%s1 + $0x15c] sm:$0xf]
  %v119 = vld [vmem:[%s1 + $0x160] sm:$0xf]
  %v120 = vld [vmem:[%s1 + $0x164] sm:$0xf]
  %v121 = vld [vmem:[%s1 + $0x168] sm:$0xf]
  %v122 = vld [vmem:[%s1 + $0x16c] sm:$0xf]
  %v123 = vld [vmem:[%s1 + $0x170] sm:$0xf]
  %v124 = vld [vmem:[%s1 + $0x174] sm:$0xf]
  %v125 = vld [vmem:[%s1 + $0x178] sm:$0xf]
  %v126 = vld [vmem:[%s1 + $0x17c] sm:$0xf]
  %v127 = vld [vmem:[%s1 + $0x180] sm:$0xf]
  %v128 = vld [vmem:[%s1 + $0x184] sm:$0xf]
  %v129 = vld [vmem:[%s1 + $0x188] sm:$0xf]
  %v130 = vld [vmem:[%s1 + $0x18c] sm:$0xf]
  %v131 = vld [vmem:[%s1 + $0x190] sm:$0xf]
  %v132 = vld [vmem:[%s1 + $0x194] sm:$0xf]
  %v133 = vld [vmem:[%s1 + $0x198] sm:$0xf]
  %v134 = vld [vmem:[%s1 + $0x19c] sm:$0xf]
  %v135 = vld [vmem:[%s1 + $0x1a0] sm:$0xf]
  %v136 = vld [vmem:[%s1 + $0x1a4] sm:$0xf]
  %v137 = vld [vmem:[%s1 + $0x1a8] sm:$0xf]
  %v138 = vld [vmem:[%s1 + $0x1ac] sm:$0xf]
  %v139 = vld [vmem:[%s1 + $0x1b0] sm:$0xf]
  %v140 = vld [vmem:[%s1 + $0x1b4] sm:$0xf]
  %v141 = vld [vmem:[%s1 + $0x1b8] sm:$0xf]
  %v142 = vld [vmem:[%s1 + $0x1bc] sm:$0xf]
  %v143 = vld [vmem:[%s1 + $0x1c0] sm:$0xf]
  %v144 = vld [vmem:[%s1 + $0x1c4] sm:$0xf]
  %v145 = vld [vmem:[%s1 + $0x1c8] sm:$0xf]
  %v146 = vld [vmem:[%s1 + $0x1cc] sm:$0xf]
  %v147 = vld [vmem:[%s1 + $0x1d0] sm:$0xf]
  %v148 = vld [vmem:[%s1 + $0x1d4] sm:$0xf]
  %v149 = vld [vmem:[%s1 + $0x1d8] sm:$0xf]
  %v150 = vld [vmem:[%s1 + $0x1dc] sm:$0xf]
  %v151 = vld [vmem:[%s1 + $0x1e0] sm:$0xf]
  %v152 = vld [vmem:[%s1 + $0x1e4] sm:$0xf]
  %v153 = vld [vmem:[%s1 + $0x1e8] sm:$0xf]
  %v154 = vld [vmem:[%s1 + $0x1ec] sm:$0xf]
  %v155 = vld [vmem:[%s1 + $0x1f0] sm:$0xf]
  %v156 = vld [vmem:[%s1 + $0x1f4] sm:$0xf]
  %v157 = vld [vmem:[%s1 + $0x1f8] sm:$0xf]
  %v158 = vld [vmem:[%s1 + $0x1fc] sm:$0xf]
  %v159 = vld [vmem:[%s2] sm:$0x1]
  %v161 = vlaneseq
  %v162 = vshrl.u32 %v161, 7
  %v163 = vsub.s32 0, %v162
  %v164 = vrot.slane %v159, %v163
  %v182 = vunpack.c.l.b16 %v15
  %v183 = vunpack.c.h.b16 %v15
  %v184 = vunpack.c.l.b16 %v16
  %v185 = vunpack.c.h.b16 %v16
  %v186 = vunpack.c.l.b16 %v17
  %v187 = vunpack.c.h.b16 %v17
  %v188 = vunpack.c.l.b16 %v18
  %v189 = vunpack.c.h.b16 %v18
  %v190 = vunpack.c.l.b16 %v19
  %v191 = vunpack.c.h.b16 %v19
  %v192 = vunpack.c.l.b16 %v20
  %v193 = vunpack.c.h.b16 %v20
  %v194 = vunpack.c.l.b16 %v21
  %v195 = vunpack.c.h.b16 %v21
  %v196 = vunpack.c.l.b16 %v22
  %v197 = vunpack.c.h.b16 %v22
  %v198 = vunpack.c.l.b16 %v23
  %v199 = vunpack.c.h.b16 %v23
  %v200 = vunpack.c.l.b16 %v24
  %v201 = vunpack.c.h.b16 %v24
  %v202 = vunpack.c.l.b16 %v25
  %v203 = vunpack.c.h.b16 %v25
  %v204 = vunpack.c.l.b16 %v26
  %v205 = vunpack.c.h.b16 %v26
  %v206 = vunpack.c.l.b16 %v27
  %v207 = vunpack.c.h.b16 %v27
  %v208 = vunpack.c.l.b16 %v28
  %v209 = vunpack.c.h.b16 %v28
  %v210 = vunpack.c.l.b16 %v29
  %v211 = vunpack.c.h.b16 %v29
  %v212 = vunpack.c.l.b16 %v30
  %v213 = vunpack.c.h.b16 %v30
  %v214 = vpack.c.b16 %v190, %v182
  %v215 = vpack.c.b16 %v191, %v183
  %v216 = vpack.c.b16 %v192, %v184
  %v217 = vpack.c.b16 %v193, %v185
  %v218 = vpack.c.b16 %v194, %v186
  %v219 = vpack.c.b16 %v195, %v187
  %v220 = vpack.c.b16 %v196, %v188
  %v221 = vpack.c.b16 %v197, %v189
  %v222 = vpack.c.b16 %v206, %v198
  %v223 = vpack.c.b16 %v207, %v199
  %v224 = vpack.c.b16 %v208, %v200
  %v225 = vpack.c.b16 %v209, %v201
  %v226 = vpack.c.b16 %v210, %v202
  %v227 = vpack.c.b16 %v211, %v203
  %v228 = vpack.c.b16 %v212, %v204
  %v229 = vpack.c.b16 %v213, %v205
  %v374 = vunpack.c.l.b16 %v31
  %v375 = vunpack.c.l.b16 %v32
  %v376 = vunpack.c.l.b16 %v33
  %v377 = vunpack.c.l.b16 %v34
  %v378 = vunpack.c.l.b16 %v35
  %v379 = vunpack.c.l.b16 %v36
  %v380 = vunpack.c.l.b16 %v37
  %v381 = vunpack.c.l.b16 %v38
  %v382 = vunpack.c.l.b16 %v39
  %v383 = vunpack.c.l.b16 %v40
  %v384 = vunpack.c.l.b16 %v41
  %v385 = vunpack.c.l.b16 %v42
  %v386 = vunpack.c.l.b16 %v43
  %v387 = vunpack.c.l.b16 %v44
  %v388 = vunpack.c.l.b16 %v45
  %v389 = vunpack.c.l.b16 %v46
  %v390 = vunpack.c.l.b16 %v47
  %v391 = vunpack.c.l.b16 %v48
  %v392 = vunpack.c.l.b16 %v49
  %v393 = vunpack.c.l.b16 %v50
  %v394 = vunpack.c.l.b16 %v51
  %v395 = vunpack.c.l.b16 %v52
  %v396 = vunpack.c.l.b16 %v53
  %v397 = vunpack.c.l.b16 %v54
  %v398 = vunpack.c.l.b16 %v55
  %v399 = vunpack.c.l.b16 %v56
  %v400 = vunpack.c.l.b16 %v57
  %v401 = vunpack.c.l.b16 %v58
  %v402 = vunpack.c.l.b16 %v59
  %v403 = vunpack.c.l.b16 %v60
  %v404 = vunpack.c.l.b16 %v61
  %v405 = vunpack.c.l.b16 %v62
  %v406 = vunpack.c.l.b16 %v63
  %v407 = vunpack.c.l.b16 %v64
  %v408 = vunpack.c.l.b16 %v65
  %v409 = vunpack.c.l.b16 %v66
  %v410 = vunpack.c.l.b16 %v67
  %v411 = vunpack.c.l.b16 %v68
  %v412 = vunpack.c.l.b16 %v69
  %v413 = vunpack.c.l.b16 %v70
  %v414 = vunpack.c.l.b16 %v71
  %v415 = vunpack.c.l.b16 %v72
  %v416 = vunpack.c.l.b16 %v73
  %v417 = vunpack.c.l.b16 %v74
  %v418 = vunpack.c.l.b16 %v75
  %v419 = vunpack.c.l.b16 %v76
  %v420 = vunpack.c.l.b16 %v77
  %v421 = vunpack.c.l.b16 %v78
  %v422 = vunpack.c.l.b16 %v79
  %v423 = vunpack.c.l.b16 %v80
  %v424 = vunpack.c.l.b16 %v81
  %v425 = vunpack.c.l.b16 %v82
  %v426 = vunpack.c.l.b16 %v83
  %v427 = vunpack.c.l.b16 %v84
  %v428 = vunpack.c.l.b16 %v85
  %v429 = vunpack.c.l.b16 %v86
  %v430 = vunpack.c.l.b16 %v87
  %v431 = vunpack.c.l.b16 %v88
  %v432 = vunpack.c.l.b16 %v89
  %v433 = vunpack.c.l.b16 %v90
  %v434 = vunpack.c.l.b16 %v91
  %v435 = vunpack.c.l.b16 %v92
  %v436 = vunpack.c.l.b16 %v93
  %v437 = vunpack.c.l.b16 %v94
  %v438 = vunpack.c.l.b16 %v95
  %v439 = vunpack.c.l.b16 %v96
  %v440 = vunpack.c.l.b16 %v97
  %v441 = vunpack.c.l.b16 %v98
  %v442 = vunpack.c.l.b16 %v99
  %v443 = vunpack.c.l.b16 %v100
  %v444 = vunpack.c.l.b16 %v101
  %v445 = vunpack.c.l.b16 %v102
  %v446 = vunpack.c.l.b16 %v103
  %v447 = vunpack.c.l.b16 %v104
  %v448 = vunpack.c.l.b16 %v105
  %v449 = vunpack.c.l.b16 %v106
  %v450 = vunpack.c.l.b16 %v107
  %v451 = vunpack.c.l.b16 %v108
  %v452 = vunpack.c.l.b16 %v109
  %v453 = vunpack.c.l.b16 %v110
  %v454 = vunpack.c.l.b16 %v111
  %v455 = vunpack.c.l.b16 %v112
  %v456 = vunpack.c.l.b16 %v113
  %v457 = vunpack.c.l.b16 %v114
  %v458 = vunpack.c.l.b16 %v115
  %v459 = vunpack.c.l.b16 %v116
  %v460 = vunpack.c.l.b16 %v117
  %v461 = vunpack.c.l.b16 %v118
  %v462 = vunpack.c.l.b16 %v119
  %v463 = vunpack.c.l.b16 %v120
  %v464 = vunpack.c.l.b16 %v121
  %v465 = vunpack.c.l.b16 %v122
  %v466 = vunpack.c.l.b16 %v123
  %v467 = vunpack.c.l.b16 %v124
  %v468 = vunpack.c.l.b16 %v125
  %v469 = vunpack.c.l.b16 %v126
  %v470 = vunpack.c.l.b16 %v127
  %v471 = vunpack.c.l.b16 %v128
  %v472 = vunpack.c.l.b16 %v129
  %v473 = vunpack.c.l.b16 %v130
  %v474 = vunpack.c.l.b16 %v131
  %v475 = vunpack.c.l.b16 %v132
  %v476 = vunpack.c.l.b16 %v133
  %v477 = vunpack.c.l.b16 %v134
  %v478 = vunpack.c.l.b16 %v135
  %v479 = vunpack.c.l.b16 %v136
  %v480 = vunpack.c.l.b16 %v137
  %v481 = vunpack.c.l.b16 %v138
  %v482 = vunpack.c.l.b16 %v139
  %v483 = vunpack.c.l.b16 %v140
  %v484 = vunpack.c.l.b16 %v141
  %v485 = vunpack.c.l.b16 %v142
  %v486 = vunpack.c.l.b16 %v143
  %v487 = vunpack.c.l.b16 %v144
  %v488 = vunpack.c.l.b16 %v145
  %v489 = vunpack.c.l.b16 %v146
  %v490 = vunpack.c.l.b16 %v147
  %v491 = vunpack.c.l.b16 %v148
  %v492 = vunpack.c.l.b16 %v149
  %v493 = vunpack.c.l.b16 %v150
  %v494 = vunpack.c.l.b16 %v151
  %v495 = vunpack.c.l.b16 %v152
  %v496 = vunpack.c.l.b16 %v153
  %v497 = vunpack.c.l.b16 %v154
  %v498 = vunpack.c.l.b16 %v155
  %v499 = vunpack.c.l.b16 %v156
  %v500 = vunpack.c.l.b16 %v157
  %v501 = vunpack.c.l.b16 %v158
  %v502 = vpack.c.b16 %v375, %v374
  %v503 = vpack.c.b16 %v377, %v376
  %v504 = vpack.c.b16 %v379, %v378
  %v505 = vpack.c.b16 %v381, %v380
  %v506 = vpack.c.b16 %v383, %v382
  %v507 = vpack.c.b16 %v385, %v384
  %v508 = vpack.c.b16 %v387, %v386
  %v509 = vpack.c.b16 %v389, %v388
  %v510 = vpack.c.b16 %v391, %v390
  %v511 = vpack.c.b16 %v393, %v392
  %v512 = vpack.c.b16 %v395, %v394
  %v513 = vpack.c.b16 %v397, %v396
  %v514 = vpack.c.b16 %v399, %v398
  %v515 = vpack.c.b16 %v401, %v400
  %v516 = vpack.c.b16 %v403, %v402
  %v517 = vpack.c.b16 %v405, %v404
  %v518 = vpack.c.b16 %v407, %v406
  %v519 = vpack.c.b16 %v409, %v408
  %v520 = vpack.c.b16 %v411, %v410
  %v521 = vpack.c.b16 %v413, %v412
  %v522 = vpack.c.b16 %v415, %v414
  %v523 = vpack.c.b16 %v417, %v416
  %v524 = vpack.c.b16 %v419, %v418
  %v525 = vpack.c.b16 %v421, %v420
  %v526 = vpack.c.b16 %v423, %v422
  %v527 = vpack.c.b16 %v425, %v424
  %v528 = vpack.c.b16 %v427, %v426
  %v529 = vpack.c.b16 %v429, %v428
  %v530 = vpack.c.b16 %v431, %v430
  %v531 = vpack.c.b16 %v433, %v432
  %v532 = vpack.c.b16 %v435, %v434
  %v533 = vpack.c.b16 %v437, %v436
  %v534 = vpack.c.b16 %v439, %v438
  %v535 = vpack.c.b16 %v441, %v440
  %v536 = vpack.c.b16 %v443, %v442
  %v537 = vpack.c.b16 %v445, %v444
  %v538 = vpack.c.b16 %v447, %v446
  %v539 = vpack.c.b16 %v449, %v448
  %v540 = vpack.c.b16 %v451, %v450
  %v541 = vpack.c.b16 %v453, %v452
  %v542 = vpack.c.b16 %v455, %v454
  %v543 = vpack.c.b16 %v457, %v456
  %v544 = vpack.c.b16 %v459, %v458
  %v545 = vpack.c.b16 %v461, %v460
  %v546 = vpack.c.b16 %v463, %v462
  %v547 = vpack.c.b16 %v465, %v464
  %v548 = vpack.c.b16 %v467, %v466
  %v549 = vpack.c.b16 %v469, %v468
  %v550 = vpack.c.b16 %v471, %v470
  %v551 = vpack.c.b16 %v473, %v472
  %v552 = vpack.c.b16 %v475, %v474
  %v553 = vpack.c.b16 %v477, %v476
  %v554 = vpack.c.b16 %v479, %v478
  %v555 = vpack.c.b16 %v481, %v480
  %v556 = vpack.c.b16 %v483, %v482
  %v557 = vpack.c.b16 %v485, %v484
  %v558 = vpack.c.b16 %v487, %v486
  %v559 = vpack.c.b16 %v489, %v488
  %v560 = vpack.c.b16 %v491, %v490
  %v561 = vpack.c.b16 %v493, %v492
  %v562 = vpack.c.b16 %v495, %v494
  %v563 = vpack.c.b16 %v497, %v496
  %v564 = vpack.c.b16 %v499, %v498
  %v565 = vpack.c.b16 %v501, %v500
  %630 = vmatprep.subr.bf16.mxu0 0
  %631 = vmatpush1.bf16.msra.mxu0 %v502
  %632 = vmatprep.subr.bf16.mxu0 0
  %633 = vmatpush1.bf16.msra.mxu0 %v503
  %634 = vmatprep.subr.bf16.mxu0 0
  %635 = vmatpush1.bf16.msra.mxu0 %v504
  %636 = vmatprep.subr.bf16.mxu0 0
  %637 = vmatpush1.bf16.msra.mxu0 %v505
  %638 = vmatprep.subr.bf16.mxu0 0
  %639 = vmatpush1.bf16.msra.mxu0 %v506
  %640 = vmatprep.subr.bf16.mxu0 0
  %641 = vmatpush1.bf16.msra.mxu0 %v507
  %642 = vmatprep.subr.bf16.mxu0 0
  %643 = vmatpush1.bf16.msra.mxu0 %v508
  %644 = vmatprep.subr.bf16.mxu0 0
  %645 = vmatpush1.bf16.msra.mxu0 %v509
  %646 = vmatprep.subr.bf16.mxu0 0
  %647 = vmatpush1.bf16.msra.mxu0 %v510
  %648 = vmatprep.subr.bf16.mxu0 0
  %649 = vmatpush1.bf16.msra.mxu0 %v511
  %650 = vmatprep.subr.bf16.mxu0 0
  %651 = vmatpush1.bf16.msra.mxu0 %v512
  %652 = vmatprep.subr.bf16.mxu0 0
  %653 = vmatpush1.bf16.msra.mxu0 %v513
  %654 = vmatprep.subr.bf16.mxu0 0
  %655 = vmatpush1.bf16.msra.mxu0 %v514
  %656 = vmatprep.subr.bf16.mxu0 0
  %657 = vmatpush1.bf16.msra.mxu0 %v515
  %658 = vmatprep.subr.bf16.mxu0 0
  %659 = vmatpush1.bf16.msra.mxu0 %v516
  %660 = vmatprep.subr.bf16.mxu0 0
  %661 = vmatpush1.bf16.msra.mxu0 %v517
  %662 = vmatprep.mubr.bf16.mxu0 %v215
  %663 = vmatmul.mubr.bf16.gmra.mrb[0].mxu0 %v214
  %v664 = vpop.f32.mrb[0].mxu0
  %v665 = vadd.f32 %v164, %v664
  %v666 = vpop.f32.mrb[0].mxu0
  %v667 = vpop.f32.mrb[0].mxu0
  %v668 = vadd.f32 %v164, %v667
  %v669 = vpop.f32.mrb[0].mxu0
  %670 = vmatprep.mubr.bf16.mxu0 %v223
  %671 = vmatmul.mubr.bf16.gmra.mrb[0].mxu0 %v222
  %v672 = vpop.f32.mrb[0].mxu0
  %v673 = vadd.f32 %v164, %v672
  %v674 = vpop.f32.mrb[0].mxu0
  %v675 = vpop.f32.mrb[0].mxu0
  %v676 = vadd.f32 %v164, %v675
  %v677 = vpop.f32.mrb[0].mxu0
  %678 = vdwg.mxu0
  %679 = vmatprep.subr.bf16.mxu0 0
  %680 = vmatpush1.bf16.msra.mxu0 %v518
  %681 = vmatprep.subr.bf16.mxu0 0
  %682 = vmatpush1.bf16.msra.mxu0 %v519
  %683 = vmatprep.subr.bf16.mxu0 0
  %684 = vmatpush1.bf16.msra.mxu0 %v520
  %685 = vmatprep.subr.bf16.mxu0 0
  %686 = vmatpush1.bf16.msra.mxu0 %v521
  %687 = vmatprep.subr.bf16.mxu0 0
  %688 = vmatpush1.bf16.msra.mxu0 %v522
  %689 = vmatprep.subr.bf16.mxu0 0
  %690 = vmatpush1.bf16.msra.mxu0 %v523
  %691 = vmatprep.subr.bf16.mxu0 0
  %692 = vmatpush1.bf16.msra.mxu0 %v524
  %693 = vmatprep.subr.bf16.mxu0 0
  %694 = vmatpush1.bf16.msra.mxu0 %v525
  %695 = vmatprep.subr.bf16.mxu0 0
  %696 = vmatpush1.bf16.msra.mxu0 %v526
  %697 = vmatprep.subr.bf16.mxu0 0
  %698 = vmatpush1.bf16.msra.mxu0 %v527
  %699 = vmatprep.subr.bf16.mxu0 0
  %700 = vmatpush1.bf16.msra.mxu0 %v528
  %701 = vmatprep.subr.bf16.mxu0 0
  %702 = vmatpush1.bf16.msra.mxu0 %v529
  %703 = vmatprep.subr.bf16.mxu0 0
  %704 = vmatpush1.bf16.msra.mxu0 %v530
  %705 = vmatprep.subr.bf16.mxu0 0
  %706 = vmatpush1.bf16.msra.mxu0 %v531
  %707 = vmatprep.subr.bf16.mxu0 0
  %708 = vmatpush1.bf16.msra.mxu0 %v532
  %709 = vmatprep.subr.bf16.mxu0 0
  %710 = vmatpush1.bf16.msra.mxu0 %v533
  %711 = vmatprep.mubr.bf16.mxu0 %v217
  %712 = vmatmul.mubr.bf16.gmra.mrb[0].mxu0 %v216
  %v713 = vpop.f32.mrb[0].mxu0
  %v714 = vadd.f32 %v665, %v713
  %v715 = vpop.f32.mrb[0].mxu0
  %v716 = vpop.f32.mrb[0].mxu0
  %v717 = vadd.f32 %v668, %v716
  %v718 = vpop.f32.mrb[0].mxu0
  %719 = vmatprep.mubr.bf16.mxu0 %v225
  %720 = vmatmul.mubr.bf16.gmra.mrb[0].mxu0 %v224
  %v721 = vpop.f32.mrb[0].mxu0
  %v722 = vadd.f32 %v673, %v721
  %v723 = vpop.f32.mrb[0].mxu0
  %v724 = vpop.f32.mrb[0].mxu0
  %v725 = vadd.f32 %v676, %v724
  %v726 = vpop.f32.mrb[0].mxu0
  %727 = vdwg.mxu0
  %728 = vmatprep.subr.bf16.mxu0 0
  %729 = vmatpush1.bf16.msra.mxu0 %v534
  %730 = vmatprep.subr.bf16.mxu0 0
  %731 = vmatpush1.bf16.msra.mxu0 %v535
  %732 = vmatprep.subr.bf16.mxu0 0
  %733 = vmatpush1.bf16.msra.mxu0 %v536
  %734 = vmatprep.subr.bf16.mxu0 0
  %735 = vmatpush1.bf16.msra.mxu0 %v537
  %736 = vmatprep.subr.bf16.mxu0 0
  %737 = vmatpush1.bf16.msra.mxu0 %v538
  %738 = vmatprep.subr.bf16.mxu0 0
  %739 = vmatpush1.bf16.msra.mxu0 %v539
  %740 = vmatprep.subr.bf16.mxu0 0
  %741 = vmatpush1.bf16.msra.mxu0 %v540
  %742 = vmatprep.subr.bf16.mxu0 0
  %743 = vmatpush1.bf16.msra.mxu0 %v541
  %744 = vmatprep.subr.bf16.mxu0 0
  %745 = vmatpush1.bf16.msra.mxu0 %v542
  %746 = vmatprep.subr.bf16.mxu0 0
  %747 = vmatpush1.bf16.msra.mxu0 %v543
  %748 = vmatprep.subr.bf16.mxu0 0
  %749 = vmatpush1.bf16.msra.mxu0 %v544
  %750 = vmatprep.subr.bf16.mxu0 0
  %751 = vmatpush1.bf16.msra.mxu0 %v545
  %752 = vmatprep.subr.bf16.mxu0 0
  %753 = vmatpush1.bf16.msra.mxu0 %v546
  %754 = vmatprep.subr.bf16.mxu0 0
  %755 = vmatpush1.bf16.msra.mxu0 %v547
  %756 = vmatprep.subr.bf16.mxu0 0
  %757 = vmatpush1.bf16.msra.mxu0 %v548
  %758 = vmatprep.subr.bf16.mxu0 0
  %759 = vmatpush1.bf16.msra.mxu0 %v549
  %760 = vmatprep.mubr.bf16.mxu0 %v219
  %761 = vmatmul.mubr.bf16.gmra.mrb[0].mxu0 %v218
  %v762 = vpop.f32.mrb[0].mxu0
  %v763 = vadd.f32 %v714, %v762
  %v764 = vpop.f32.mrb[0].mxu0
  %v765 = vpop.f32.mrb[0].mxu0
  %v766 = vadd.f32 %v717, %v765
  %v767 = vpop.f32.mrb[0].mxu0
  %768 = vmatprep.mubr.bf16.mxu0 %v227
  %769 = vmatmul.mubr.bf16.gmra.mrb[0].mxu0 %v226
  %v770 = vpop.f32.mrb[0].mxu0
  %v771 = vadd.f32 %v722, %v770
  %v772 = vpop.f32.mrb[0].mxu0
  %v773 = vpop.f32.mrb[0].mxu0
  %v774 = vadd.f32 %v725, %v773
  %v775 = vpop.f32.mrb[0].mxu0
  %776 = vdwg.mxu0
  %777 = vmatprep.subr.bf16.mxu0 0
  %778 = vmatpush1.bf16.msra.mxu0 %v550
  %779 = vmatprep.subr.bf16.mxu0 0
  %780 = vmatpush1.bf16.msra.mxu0 %v551
  %781 = vmatprep.subr.bf16.mxu0 0
  %782 = vmatpush1.bf16.msra.mxu0 %v552
  %783 = vmatprep.subr.bf16.mxu0 0
  %784 = vmatpush1.bf16.msra.mxu0 %v553
  %785 = vmatprep.subr.bf16.mxu0 0
  %786 = vmatpush1.bf16.msra.mxu0 %v554
  %787 = vmatprep.subr.bf16.mxu0 0
  %788 = vmatpush1.bf16.msra.mxu0 %v555
  %789 = vmatprep.subr.bf16.mxu0 0
  %790 = vmatpush1.bf16.msra.mxu0 %v556
  %791 = vmatprep.subr.bf16.mxu0 0
  %792 = vmatpush1.bf16.msra.mxu0 %v557
  %793 = vmatprep.subr.bf16.mxu0 0
  %794 = vmatpush1.bf16.msra.mxu0 %v558
  %795 = vmatprep.subr.bf16.mxu0 0
  %796 = vmatpush1.bf16.msra.mxu0 %v559
  %797 = vmatprep.subr.bf16.mxu0 0
  %798 = vmatpush1.bf16.msra.mxu0 %v560
  %799 = vmatprep.subr.bf16.mxu0 0
  %800 = vmatpush1.bf16.msra.mxu0 %v561
  %801 = vmatprep.subr.bf16.mxu0 0
  %802 = vmatpush1.bf16.msra.mxu0 %v562
  %803 = vmatprep.subr.bf16.mxu0 0
  %804 = vmatpush1.bf16.msra.mxu0 %v563
  %805 = vmatprep.subr.bf16.mxu0 0
  %806 = vmatpush1.bf16.msra.mxu0 %v564
  %807 = vmatprep.subr.bf16.mxu0 0
  %808 = vmatpush1.bf16.msra.mxu0 %v565
  %809 = vmatprep.mubr.bf16.mxu0 %v221
  %810 = vmatmul.mubr.bf16.gmra.mrb[0].mxu0 %v220
  %v811 = vpop.f32.mrb[0].mxu0
  %v812 = vadd.f32 %v763, %v811
  %v813 = vpop.f32.mrb[0].mxu0
  %v814 = vpop.f32.mrb[0].mxu0
  %v815 = vadd.f32 %v766, %v814
  %v816 = vpop.f32.mrb[0].mxu0
  %817 = vmatprep.mubr.bf16.mxu0 %v229
  %818 = vmatmul.mubr.bf16.gmra.mrb[0].mxu0 %v228
  %v819 = vpop.f32.mrb[0].mxu0
  %v820 = vadd.f32 %v771, %v819
  %v821 = vpop.f32.mrb[0].mxu0
  %v822 = vpop.f32.mrb[0].mxu0
  %v823 = vadd.f32 %v774, %v822
  %v824 = vpop.f32.mrb[0].mxu0
  %825 = vdwg.mxu0
  %v826 = vmax.f32 %v812, 0.0
  %v827 = vmax.f32 %v815, 0.0
  %v828 = vmax.f32 %v820, 0.0
  %v829 = vmax.f32 %v823, 0.0
  %830 = vst [vmem:[%s3] sm:$0xff] %v826
  %831 = vst [vmem:[%s3 + $0x8] sm:$0xff] %v827
  %832 = vst [vmem:[%s3 + $0x10] sm:$0xff] %v828
  %833 = vst [vmem:[%s3 + $0x18] sm:$0xff] %v829
  // Predicated region
  $region14: #{semantic_learner_forward.34} parent=0 // pred_check
    _
  $region15: #{semantic_learner_forward.34} parent=0 // pred_check_branch
    %835 = sbr.rel (0) target = $region17
  $region16: #{semantic_learner_forward.34} parent=0 // pred_region
    _
  $region17: #{semantic_learner_forward.34} parent=0 // pred_fallthru
    _
  // Predicated region
  $region18: #{semantic_learner_forward.34} parent=0 // pred_check
    _
  $region19: #{semantic_learner_forward.34} parent=0 // pred_check_branch
    %837 = sbr.rel (0) target = $region21
  $region20: #{semantic_learner_forward.34} parent=0 // pred_region
    _
  $region21: #{semantic_learner_forward.34} parent=0 // pred_fallthru
    _

// kernel: semantic_learner_forward.36
$region0: #{semantic_learner_forward.36}
  #allocation0 [shape = 'u32[]', space=smem, size = 0x4, offset = 0x4, fixed_abs, tag = 'smem constant byte address 0x4 - core index']
  #allocation1 [shape = 'u32[144,128]{1,0:T(1,128)}', space=vmem, size = 0x12000, scoped, tag = 'internal scratch']
  %s0 = inlined_call_operand.vmem [shape: f32[32,128], index: 0, kind: input, shape index: {}]
  %s1 = inlined_call_operand.vmem [shape: f32[1,128], index: 1, kind: output, shape index: {0}]
  %s2 = inlined_call_operand.vmem [shape: f32[1,128], index: 2, kind: output, shape index: {1}]
  %3 = xla_tuple %s1, %s2
  %s4 = sld [smem:[#allocation0]]
  $region26: #{semantic_learner_forward.36} parent=0
    _
  %s6 = ssub.s32 1, %s4
  %s7 = scalar_select 0, %s6, %s4
  // Predicated region
  $region2: #{semantic_learner_forward.36} parent=0 // pred_check
    _
  $region3: #{semantic_learner_forward.36} parent=0 // pred_check_branch
    %9 = sbr.rel (0) target = $region5
  $region4: #{semantic_learner_forward.36} parent=0 // pred_region
    _
  $region5: #{semantic_learner_forward.36} parent=0 // pred_fallthru
    _
  %p10 = scmp.eq.s32.totalorder 0, 0
  // Predicated region
  $region6: #{semantic_learner_forward.36} parent=0 // pred_check
    %p11 = pneg %p10
  $region7: #{semantic_learner_forward.36} parent=0 // pred_check_branch
    %13 = sbr.rel (%p11) target = $region9
  $region8: #{semantic_learner_forward.36} parent=0 // pred_region
    %14 = vst [vmem:[%s1] sm:$0x1] 0.0
    %15 = vst [vmem:[%s2] sm:$0x1] 0.0
  $region9: #{semantic_learner_forward.36} parent=0 // pred_fallthru
    _
  %v16 = vld [vmem:[%s0] sm:$0xff]
  %v17 = vld [vmem:[%s0 + $0x8] sm:$0xff]
  %v18 = vld [vmem:[%s0 + $0x10] sm:$0xff]
  %v19 = vld [vmem:[%s0 + $0x18] sm:$0xff]
  %v20 = vld [vmem:[%s1] sm:$0x1]
  %v21 = vadd.f32 %v16, %v17
  %v22 = vadd.f32 %v21, %v18
  %v23 = vadd.f32 %v22, %v19
  %v24 = vrot.slane %v23, 4
  %v25 = vadd.f32 %v23, %v24
  %v26 = vrot.slane %v25, 2
  %v27 = vadd.f32 %v25, %v26
  %v28 = vrot.slane %v27, 1
  %v29 = vadd.f32 %v27, %v28
  %v30 = vadd.f32 %v20, %v29
  %31 = vst [vmem:[%s1] sm:$0x1] %v30
  %v32 = vld [vmem:[%s2] sm:$0x1]
  %v33 = vmul.f32 %v16, %v16
  %v34 = vmul.f32 %v17, %v17
  %v35 = vmul.f32 %v18, %v18
  %v36 = vmul.f32 %v19, %v19
  %v37 = vadd.f32 %v33, %v34
  %v38 = vadd.f32 %v37, %v35
  %v39 = vadd.f32 %v38, %v36
  %v40 = vrot.slane %v39, 4
  %v41 = vadd.f32 %v39, %v40
  %v42 = vrot.slane %v41, 2
  %v43 = vadd.f32 %v41, %v42
  %v44 = vrot.slane %v43, 1
  %v45 = vadd.f32 %v43, %v44
  %v46 = vadd.f32 %v32, %v45
  %47 = vst [vmem:[%s2] sm:$0x1] %v46
  // Predicated region
  $region10: #{semantic_learner_forward.36} parent=0 // pred_check
    _
  $region11: #{semantic_learner_forward.36} parent=0 // pred_check_branch
    %49 = sbr.rel (0) target = $region13
  $region12: #{semantic_learner_forward.36} parent=0 // pred_region
    _
  $region13: #{semantic_learner_forward.36} parent=0 // pred_fallthru
    _
  // Predicated region
  $region14: #{semantic_learner_forward.36} parent=0 // pred_check
    _
  $region15: #{semantic_learner_forward.36} parent=0 // pred_check_branch
    %51 = sbr.rel (0) target = $region17
  $region16: #{semantic_learner_forward.36} parent=0 // pred_region
    _
  $region17: #{semantic_learner_forward.36} parent=0 // pred_fallthru
    _
  // Predicated region
  $region18: #{semantic_learner_forward.36} parent=0 // pred_check
    _
  $region19: #{semantic_learner_forward.36} parent=0 // pred_check_branch
    %53 = sbr.rel (0) target = $region21
  $region20: #{semantic_learner_forward.36} parent=0 // pred_region
    _
  $region21: #{semantic_learner_forward.36} parent=0 // pred_fallthru
    _
  // Predicated region
  $region22: #{semantic_learner_forward.36} parent=0 // pred_check
    _
  $region23: #{semantic_learner_forward.36} parent=0 // pred_check_branch
    %55 = sbr.rel (0) target = $region25
  $region24: #{semantic_learner_forward.36} parent=0 // pred_region
    _
  $region25: #{semantic_learner_forward.36} parent=0 // pred_fallthru
    _

// kernel: semantic_learner_forward.40
$region0: #{semantic_learner_forward.40}
  #allocation0 [shape = 'u32[]', space=smem, size = 0x4, offset = 0x4, fixed_abs, tag = 'smem constant byte address 0x4 - core index']
  #allocation1 [shape = 'u32[144,128]{1,0:T(1,128)}', space=vmem, size = 0x12000, scoped, tag = 'internal scratch']
  %s0 = inlined_call_operand.vmem [shape: f32[32,128], index: 0, kind: input, shape index: {}]
  %s1 = inlined_call_operand.vmem [shape: f32[1,128], index: 1, kind: input, shape index: {}]
  %s2 = inlined_call_operand.vmem [shape: f32[1,128], index: 2, kind: input, shape index: {}]
  %s3 = inlined_call_operand.vmem [shape: f32[32,128], index: 3, kind: input, shape index: {}]
  %s4 = inlined_call_operand.vmem [shape: f32[32,128], index: 4, kind: output, shape index: {}]
  %s5 = sld [smem:[#allocation0]]
  $region26: #{semantic_learner_forward.40} parent=0
    _
  %s7 = ssub.s32 1, %s5
  %s8 = scalar_select 0, %s7, %s5
  // Predicated region
  $region2: #{semantic_learner_forward.40} parent=0 // pred_check
    _
  $region3: #{semantic_learner_forward.40} parent=0 // pred_check_branch
    %10 = sbr.rel (0) target = $region5
  $region4: #{semantic_learner_forward.40} parent=0 // pred_region
    _
  $region5: #{semantic_learner_forward.40} parent=0 // pred_fallthru
    _
  // Predicated region
  $region6: #{semantic_learner_forward.40} parent=0 // pred_check
    _
  $region7: #{semantic_learner_forward.40} parent=0 // pred_check_branch
    %12 = sbr.rel (0) target = $region9
  $region8: #{semantic_learner_forward.40} parent=0 // pred_region
    _
  $region9: #{semantic_learner_forward.40} parent=0 // pred_fallthru
    _
  // Predicated region
  $region10: #{semantic_learner_forward.40} parent=0 // pred_check
    _
  $region11: #{semantic_learner_forward.40} parent=0 // pred_check_branch
    %14 = sbr.rel (0) target = $region13
  $region12: #{semantic_learner_forward.40} parent=0 // pred_region
    _
  $region13: #{semantic_learner_forward.40} parent=0 // pred_fallthru
    _
  // Predicated region
  $region14: #{semantic_learner_forward.40} parent=0 // pred_check
    _
  $region15: #{semantic_learner_forward.40} parent=0 // pred_check_branch
    %16 = sbr.rel (0) target = $region17
  $region16: #{semantic_learner_forward.40} parent=0 // pred_region
    _
  $region17: #{semantic_learner_forward.40} parent=0 // pred_fallthru
    _
  %v17 = vld [vmem:[%s0] sm:$0xff]
  %v18 = vld [vmem:[%s0 + $0x8] sm:$0xff]
  %v19 = vld [vmem:[%s0 + $0x10] sm:$0xff]
  %v20 = vld [vmem:[%s0 + $0x18] sm:$0xff]
  %v21 = vld [vmem:[%s1] sm:$0x1]
  %v23 = vlaneseq
  %v24 = vshrl.u32 %v23, 7
  %v25 = vsub.s32 0, %v24
  %v26 = vrot.slane %v21, %v25
  %v28 = vmul.f32 %v17, %v26
  %v29 = vmul.f32 %v18, %v26
  %v30 = vmul.f32 %v19, %v26
  %v31 = vmul.f32 %v20, %v26
  %v32 = vld [vmem:[%s2] sm:$0x1]
  %v34 = vlaneseq
  %v35 = vshrl.u32 %v34, 7
  %v36 = vsub.s32 0, %v35
  %v37 = vrot.slane %v32, %v36
  %v39 = vadd.f32 %v28, %v37
  %v40 = vadd.f32 %v29, %v37
  %v41 = vadd.f32 %v30, %v37
  %v42 = vadd.f32 %v31, %v37
  %v43 = vld [vmem:[%s3] sm:$0xff]
  %v44 = vld [vmem:[%s3 + $0x8] sm:$0xff]
  %v45 = vld [vmem:[%s3 + $0x10] sm:$0xff]
  %v46 = vld [vmem:[%s3 + $0x18] sm:$0xff]
  %v47 = vadd.f32 %v39, %v43
  %v48 = vadd.f32 %v40, %v44
  %v49 = vadd.f32 %v41, %v45
  %v50 = vadd.f32 %v42, %v46
  %v51 = vmax.f32 %v47, 0.0
  %v52 = vmax.f32 %v48, 0.0
  %v53 = vmax.f32 %v49, 0.0
  %v54 = vmax.f32 %v50, 0.0
  %55 = vst [vmem:[%s4] sm:$0xff] %v51
  %56 = vst [vmem:[%s4 + $0x8] sm:$0xff] %v52
  %57 = vst [vmem:[%s4 + $0x10] sm:$0xff] %v53
  %58 = vst [vmem:[%s4 + $0x18] sm:$0xff] %v54
  // Predicated region
  $region18: #{semantic_learner_forward.40} parent=0 // pred_check
    _
  $region19: #{semantic_learner_forward.40} parent=0 // pred_check_branch
    %60 = sbr.rel (0) target = $region21
  $region20: #{semantic_learner_forward.40} parent=0 // pred_region
    _
  $region21: #{semantic_learner_forward.40} parent=0 // pred_fallthru
    _
  // Predicated region
  $region22: #{semantic_learner_forward.40} parent=0 // pred_check
    _
  $region23: #{semantic_learner_forward.40} parent=0 // pred_check_branch
    %62 = sbr.rel (0) target = $region25
  $region24: #{semantic_learner_forward.40} parent=0 // pred_region
    _
  $region25: #{semantic_learner_forward.40} parent=0 // pred_fallthru
    _

// kernel: semantic_learner_forward.37
$region0: #{semantic_learner_forward.37}
  #allocation0 [shape = 'u32[]', space=smem, size = 0x4, offset = 0x4, fixed_abs, tag = 'smem constant byte address 0x4 - core index']
  #allocation1 [shape = 'u32[144,128]{1,0:T(1,128)}', space=vmem, size = 0x12000, scoped, tag = 'internal scratch']
  %s0 = inlined_call_operand.vmem [shape: f32[32,128], index: 0, kind: input, shape index: {}]
  %s1 = inlined_call_operand.vmem [shape: f32[1,128], index: 1, kind: input, shape index: {}]
  %s2 = inlined_call_operand.vmem [shape: f32[1,128], index: 2, kind: input, shape index: {}]
  %s3 = inlined_call_operand.vmem [shape: f32[32,128], index: 3, kind: output, shape index: {}]
  %s4 = sld [smem:[#allocation0]]
  $region22: #{semantic_learner_forward.37} parent=0
    _
  %s6 = ssub.s32 1, %s4
  %s7 = scalar_select 0, %s6, %s4
  // Predicated region
  $region2: #{semantic_learner_forward.37} parent=0 // pred_check
    _
  $region3: #{semantic_learner_forward.37} parent=0 // pred_check_branch
    %9 = sbr.rel (0) target = $region5
  $region4: #{semantic_learner_forward.37} parent=0 // pred_region
    _
  $region5: #{semantic_learner_forward.37} parent=0 // pred_fallthru
    _
  // Predicated region
  $region6: #{semantic_learner_forward.37} parent=0 // pred_check
    _
  $region7: #{semantic_learner_forward.37} parent=0 // pred_check_branch
    %11 = sbr.rel (0) target = $region9
  $region8: #{semantic_learner_forward.37} parent=0 // pred_region
    _
  $region9: #{semantic_learner_forward.37} parent=0 // pred_fallthru
    _
  // Predicated region
  $region10: #{semantic_learner_forward.37} parent=0 // pred_check
    _
  $region11: #{semantic_learner_forward.37} parent=0 // pred_check_branch
    %13 = sbr.rel (0) target = $region13
  $region12: #{semantic_learner_forward.37} parent=0 // pred_region
    _
  $region13: #{semantic_learner_forward.37} parent=0 // pred_fallthru
    _
  %v14 = vld [vmem:[%s0] sm:$0xff]
  %v15 = vld [vmem:[%s0 + $0x8] sm:$0xff]
  %v16 = vld [vmem:[%s0 + $0x10] sm:$0xff]
  %v17 = vld [vmem:[%s0 + $0x18] sm:$0xff]
  %v18 = vld [vmem:[%s1] sm:$0x1]
  %v20 = vlaneseq
  %v21 = vshrl.u32 %v20, 7
  %v22 = vsub.s32 0, %v21
  %v23 = vrot.slane %v18, %v22
  %v25 = vmul.f32 %v14, %v23
  %v26 = vmul.f32 %v15, %v23
  %v27 = vmul.f32 %v16, %v23
  %v28 = vmul.f32 %v17, %v23
  %v29 = vld [vmem:[%s2] sm:$0x1]
  %v31 = vlaneseq
  %v32 = vshrl.u32 %v31, 7
  %v33 = vsub.s32 0, %v32
  %v34 = vrot.slane %v29, %v33
  %v36 = vadd.f32 %v25, %v34
  %v37 = vadd.f32 %v26, %v34
  %v38 = vadd.f32 %v27, %v34
  %v39 = vadd.f32 %v28, %v34
  %v40 = vmax.f32 %v36, 0.0
  %v41 = vmax.f32 %v37, 0.0
  %v42 = vmax.f32 %v38, 0.0
  %v43 = vmax.f32 %v39, 0.0
  %44 = vst [vmem:[%s3] sm:$0xff] %v40
  %45 = vst [vmem:[%s3 + $0x8] sm:$0xff] %v41
  %46 = vst [vmem:[%s3 + $0x10] sm:$0xff] %v42
  %47 = vst [vmem:[%s3 + $0x18] sm:$0xff] %v43
  // Predicated region
  $region14: #{semantic_learner_forward.37} parent=0 // pred_check
    _
  $region15: #{semantic_learner_forward.37} parent=0 // pred_check_branch
    %49 = sbr.rel (0) target = $region17
  $region16: #{semantic_learner_forward.37} parent=0 // pred_region
    _
  $region17: #{semantic_learner_forward.37} parent=0 // pred_fallthru
    _
  // Predicated region
  $region18: #{semantic_learner_forward.37} parent=0 // pred_check
    _
  $region19: #{semantic_learner_forward.37} parent=0 // pred_check_branch
    %51 = sbr.rel (0) target = $region21
  $region20: #{semantic_learner_forward.37} parent=0 // pred_region
    _
  $region21: #{semantic_learner_forward.37} parent=0 // pred_fallthru
    _

// kernel: semantic_learner_forward.35
$region0: #{semantic_learner_forward.35}
  #allocation0 [shape = 'u32[]', space=smem, size = 0x4, offset = 0x4, fixed_abs, tag = 'smem constant byte address 0x4 - core index']
  #allocation1 [shape = 'u32[144,128]{1,0:T(1,128)}', space=vmem, size = 0x12000, scoped, tag = 'internal scratch']
  %s0 = inlined_call_operand.vmem [shape: bf16[32,1152], index: 0, kind: input, shape index: {}]
  %s1 = inlined_call_operand.vmem [shape: bf16[1152,128], index: 1, kind: input, shape index: {}]
  %s2 = inlined_call_operand.vmem [shape: f32[32,128], index: 2, kind: output, shape index: {}]
  %s3 = sld [smem:[#allocation0]]
  $region18: #{semantic_learner_forward.35} parent=0
    _
  %s5 = ssub.s32 1, %s3
  %s6 = scalar_select 0, %s5, %s3
  // Predicated region
  $region2: #{semantic_learner_forward.35} parent=0 // pred_check
    _
  $region3: #{semantic_learner_forward.35} parent=0 // pred_check_branch
    %8 = sbr.rel (0) target = $region5
  $region4: #{semantic_learner_forward.35} parent=0 // pred_region
    _
  $region5: #{semantic_learner_forward.35} parent=0 // pred_fallthru
    _
  // Predicated region
  $region6: #{semantic_learner_forward.35} parent=0 // pred_check
    _
  $region7: #{semantic_learner_forward.35} parent=0 // pred_check_branch
    %10 = sbr.rel (0) target = $region9
  $region8: #{semantic_learner_forward.35} parent=0 // pred_region
    _
  $region9: #{semantic_learner_forward.35} parent=0 // pred_fallthru
    _
  %v12 = vld [vmem:[%s0] sm:$0xff]
  %v13 = vld [vmem:[%s0 + $0x8] sm:$0xff]
  %v14 = vld [vmem:[%s0 + $0x10] sm:$0xff]
  %v15 = vld [vmem:[%s0 + $0x18] sm:$0xff]
  %v16 = vld [vmem:[%s0 + $0x20] sm:$0xf]
  %v17 = vld [vmem:[%s0 + $0x24] sm:$0xff]
  %v18 = vld [vmem:[%s0 + $0x2c] sm:$0xff]
  %v19 = vld [vmem:[%s0 + $0x34] sm:$0xff]
  %v20 = vld [vmem:[%s0 + $0x3c] sm:$0xff]
  %v21 = vld [vmem:[%s0 + $0x44] sm:$0xf]
  %v22 = vld [vmem:[%s0 + $0x48] sm:$0xff]
  %v23 = vld [vmem:[%s0 + $0x50] sm:$0xff]
  %v24 = vld [vmem:[%s0 + $0x58] sm:$0xff]
  %v25 = vld [vmem:[%s0 + $0x60] sm:$0xff]
  %v26 = vld [vmem:[%s0 + $0x68] sm:$0xf]
  %v27 = vld [vmem:[%s0 + $0x6c] sm:$0xff]
  %v28 = vld [vmem:[%s0 + $0x74] sm:$0xff]
  %v29 = vld [vmem:[%s0 + $0x7c] sm:$0xff]
  %v30 = vld [vmem:[%s0 + $0x84] sm:$0xff]
  %v31 = vld [vmem:[%s0 + $0x8c] sm:$0xf]
  %v32 = vld [vmem:[%s1] sm:$0xf]
  %v33 = vld [vmem:[%s1 + $0x4] sm:$0xf]
  %v34 = vld [vmem:[%s1 + $0x8] sm:$0xf]
  %v35 = vld [vmem:[%s1 + $0xc] sm:$0xf]
  %v36 = vld [vmem:[%s1 + $0x10] sm:$0xf]
  %v37 = vld [vmem:[%s1 + $0x14] sm:$0xf]
  %v38 = vld [vmem:[%s1 + $0x18] sm:$0xf]
  %v39 = vld [vmem:[%s1 + $0x1c] sm:$0xf]
  %v40 = vld [vmem:[%s1 + $0x20] sm:$0xf]
  %v41 = vld [vmem:[%s1 + $0x24] sm:$0xf]
  %v42 = vld [vmem:[%s1 + $0x28] sm:$0xf]
  %v43 = vld [vmem:[%s1 + $0x2c] sm:$0xf]
  %v44 = vld [vmem:[%s1 + $0x30] sm:$0xf]
  %v45 = vld [vmem:[%s1 + $0x34] sm:$0xf]
  %v46 = vld [vmem:[%s1 + $0x38] sm:$0xf]
  %v47 = vld [vmem:[%s1 + $0x3c] sm:$0xf]
  %v48 = vld [vmem:[%s1 + $0x40] sm:$0xf]
  %v49 = vld [vmem:[%s1 + $0x44] sm:$0xf]
  %v50 = vld [vmem:[%s1 + $0x48] sm:$0xf]
  %v51 = vld [vmem:[%s1 + $0x4c] sm:$0xf]
  %v52 = vld [vmem:[%s1 + $0x50] sm:$0xf]
  %v53 = vld [vmem:[%s1 + $0x54] sm:$0xf]
  %v54 = vld [vmem:[%s1 + $0x58] sm:$0xf]
  %v55 = vld [vmem:[%s1 + $0x5c] sm:$0xf]
  %v56 = vld [vmem:[%s1 + $0x60] sm:$0xf]
  %v57 = vld [vmem:[%s1 + $0x64] sm:$0xf]
  %v58 = vld [vmem:[%s1 + $0x68] sm:$0xf]
  %v59 = vld [vmem:[%s1 + $0x6c] sm:$0xf]
  %v60 = vld [vmem:[%s1 + $0x70] sm:$0xf]
  %v61 = vld [vmem:[%s1 + $0x74] sm:$0xf]
  %v62 = vld [vmem:[%s1 + $0x78] sm:$0xf]
  %v63 = vld [vmem:[%s1 + $0x7c] sm:$0xf]
  %v64 = vld [vmem:[%s1 + $0x80] sm:$0xf]
  %v65 = vld [vmem:[%s1 + $0x84] sm:$0xf]
  %v66 = vld [vmem:[%s1 + $0x88] sm:$0xf]
  %v67 = vld [vmem:[%s1 + $0x8c] sm:$0xf]
  %v68 = vld [vmem:[%s1 + $0x90] sm:$0xf]
  %v69 = vld [vmem:[%s1 + $0x94] sm:$0xf]
  %v70 = vld [vmem:[%s1 + $0x98] sm:$0xf]
  %v71 = vld [vmem:[%s1 + $0x9c] sm:$0xf]
  %v72 = vld [vmem:[%s1 + $0xa0] sm:$0xf]
  %v73 = vld [vmem:[%s1 + $0xa4] sm:$0xf]
  %v74 = vld [vmem:[%s1 + $0xa8] sm:$0xf]
  %v75 = vld [vmem:[%s1 + $0xac] sm:$0xf]
  %v76 = vld [vmem:[%s1 + $0xb0] sm:$0xf]
  %v77 = vld [vmem:[%s1 + $0xb4] sm:$0xf]
  %v78 = vld [vmem:[%s1 + $0xb8] sm:$0xf]
  %v79 = vld [vmem:[%s1 + $0xbc] sm:$0xf]
  %v80 = vld [vmem:[%s1 + $0xc0] sm:$0xf]
  %v81 = vld [vmem:[%s1 + $0xc4] sm:$0xf]
  %v82 = vld [vmem:[%s1 + $0xc8] sm:$0xf]
  %v83 = vld [vmem:[%s1 + $0xcc] sm:$0xf]
  %v84 = vld [vmem:[%s1 + $0xd0] sm:$0xf]
  %v85 = vld [vmem:[%s1 + $0xd4] sm:$0xf]
  %v86 = vld [vmem:[%s1 + $0xd8] sm:$0xf]
  %v87 = vld [vmem:[%s1 + $0xdc] sm:$0xf]
  %v88 = vld [vmem:[%s1 + $0xe0] sm:$0xf]
  %v89 = vld [vmem:[%s1 + $0xe4] sm:$0xf]
  %v90 = vld [vmem:[%s1 + $0xe8] sm:$0xf]
  %v91 = vld [vmem:[%s1 + $0xec] sm:$0xf]
  %v92 = vld [vmem:[%s1 + $0xf0] sm:$0xf]
  %v93 = vld [vmem:[%s1 + $0xf4] sm:$0xf]
  %v94 = vld [vmem:[%s1 + $0xf8] sm:$0xf]
  %v95 = vld [vmem:[%s1 + $0xfc] sm:$0xf]
  %v96 = vld [vmem:[%s1 + $0x100] sm:$0xf]
  %v97 = vld [vmem:[%s1 + $0x104] sm:$0xf]
  %v98 = vld [vmem:[%s1 + $0x108] sm:$0xf]
  %v99 = vld [vmem:[%s1 + $0x10c] sm:$0xf]
  %v100 = vld [vmem:[%s1 + $0x110] sm:$0xf]
  %v101 = vld [vmem:[%s1 + $0x114] sm:$0xf]
  %v102 = vld [vmem:[%s1 + $0x118] sm:$0xf]
  %v103 = vld [vmem:[%s1 + $0x11c] sm:$0xf]
  %v104 = vld [vmem:[%s1 + $0x120] sm:$0xf]
  %v105 = vld [vmem:[%s1 + $0x124] sm:$0xf]
  %v106 = vld [vmem:[%s1 + $0x128] sm:$0xf]
  %v107 = vld [vmem:[%s1 + $0x12c] sm:$0xf]
  %v108 = vld [vmem:[%s1 + $0x130] sm:$0xf]
  %v109 = vld [vmem:[%s1 + $0x134] sm:$0xf]
  %v110 = vld [vmem:[%s1 + $0x138] sm:$0xf]
  %v111 = vld [vmem:[%s1 + $0x13c] sm:$0xf]
  %v112 = vld [vmem:[%s1 + $0x140] sm:$0xf]
  %v113 = vld [vmem:[%s1 + $0x144] sm:$0xf]
  %v114 = vld [vmem:[%s1 + $0x148] sm:$0xf]
  %v115 = vld [vmem:[%s1 + $0x14c] sm:$0xf]
  %v116 = vld [vmem:[%s1 + $0x150] sm:$0xf]
  %v117 = vld [vmem:[%s1 + $0x154] sm:$0xf]
  %v118 = vld [vmem:[%s1 + $0x158] sm:$0xf]
  %v119 = vld [vmem:[%s1 + $0x15c] sm:$0xf]
  %v120 = vld [vmem:[%s1 + $0x160] sm:$0xf]
  %v121 = vld [vmem:[%s1 + $0x164] sm:$0xf]
  %v122 = vld [vmem:[%s1 + $0x168] sm:$0xf]
  %v123 = vld [vmem:[%s1 + $0x16c] sm:$0xf]
  %v124 = vld [vmem:[%s1 + $0x170] sm:$0xf]
  %v125 = vld [vmem:[%s1 + $0x174] sm:$0xf]
  %v126 = vld [vmem:[%s1 + $0x178] sm:$0xf]
  %v127 = vld [vmem:[%s1 + $0x17c] sm:$0xf]
  %v128 = vld [vmem:[%s1 + $0x180] sm:$0xf]
  %v129 = vld [vmem:[%s1 + $0x184] sm:$0xf]
  %v130 = vld [vmem:[%s1 + $0x188] sm:$0xf]
  %v131 = vld [vmem:[%s1 + $0x18c] sm:$0xf]
  %v132 = vld [vmem:[%s1 + $0x190] sm:$0xf]
  %v133 = vld [vmem:[%s1 + $0x194] sm:$0xf]
  %v134 = vld [vmem:[%s1 + $0x198] sm:$0xf]
  %v135 = vld [vmem:[%s1 + $0x19c] sm:$0xf]
  %v136 = vld [vmem:[%s1 + $0x1a0] sm:$0xf]
  %v137 = vld [vmem:[%s1 + $0x1a4] sm:$0xf]
  %v138 = vld [vmem:[%s1 + $0x1a8] sm:$0xf]
  %v139 = vld [vmem:[%s1 + $0x1ac] sm:$0xf]
  %v140 = vld [vmem:[%s1 + $0x1b0] sm:$0xf]
  %v141 = vld [vmem:[%s1 + $0x1b4] sm:$0xf]
  %v142 = vld [vmem:[%s1 + $0x1b8] sm:$0xf]
  %v143 = vld [vmem:[%s1 + $0x1bc] sm:$0xf]
  %v144 = vld [vmem:[%s1 + $0x1c0] sm:$0xf]
  %v145 = vld [vmem:[%s1 + $0x1c4] sm:$0xf]
  %v146 = vld [vmem:[%s1 + $0x1c8] sm:$0xf]
  %v147 = vld [vmem:[%s1 + $0x1cc] sm:$0xf]
  %v148 = vld [vmem:[%s1 + $0x1d0] sm:$0xf]
  %v149 = vld [vmem:[%s1 + $0x1d4] sm:$0xf]
  %v150 = vld [vmem:[%s1 + $0x1d8] sm:$0xf]
  %v151 = vld [vmem:[%s1 + $0x1dc] sm:$0xf]
  %v152 = vld [vmem:[%s1 + $0x1e0] sm:$0xf]
  %v153 = vld [vmem:[%s1 + $0x1e4] sm:$0xf]
  %v154 = vld [vmem:[%s1 + $0x1e8] sm:$0xf]
  %v155 = vld [vmem:[%s1 + $0x1ec] sm:$0xf]
  %v156 = vld [vmem:[%s1 + $0x1f0] sm:$0xf]
  %v157 = vld [vmem:[%s1 + $0x1f4] sm:$0xf]
  %v158 = vld [vmem:[%s1 + $0x1f8] sm:$0xf]
  %v159 = vld [vmem:[%s1 + $0x1fc] sm:$0xf]
  %v160 = vld [vmem:[%s1 + $0x200] sm:$0xf]
  %v161 = vld [vmem:[%s1 + $0x204] sm:$0xf]
  %v162 = vld [vmem:[%s1 + $0x208] sm:$0xf]
  %v163 = vld [vmem:[%s1 + $0x20c] sm:$0xf]
  %v164 = vld [vmem:[%s1 + $0x210] sm:$0xf]
  %v165 = vld [vmem:[%s1 + $0x214] sm:$0xf]
  %v166 = vld [vmem:[%s1 + $0x218] sm:$0xf]
  %v167 = vld [vmem:[%s1 + $0x21c] sm:$0xf]
  %v168 = vld [vmem:[%s1 + $0x220] sm:$0xf]
  %v169 = vld [vmem:[%s1 + $0x224] sm:$0xf]
  %v170 = vld [vmem:[%s1 + $0x228] sm:$0xf]
  %v171 = vld [vmem:[%s1 + $0x22c] sm:$0xf]
  %v172 = vld [vmem:[%s1 + $0x230] sm:$0xf]
  %v173 = vld [vmem:[%s1 + $0x234] sm:$0xf]
  %v174 = vld [vmem:[%s1 + $0x238] sm:$0xf]
  %v175 = vld [vmem:[%s1 + $0x23c] sm:$0xf]
  %v196 = vunpack.c.l.b16 %v12
  %v197 = vunpack.c.h.b16 %v12
  %v198 = vunpack.c.l.b16 %v13
  %v199 = vunpack.c.h.b16 %v13
  %v200 = vunpack.c.l.b16 %v14
  %v201 = vunpack.c.h.b16 %v14
  %v202 = vunpack.c.l.b16 %v15
  %v203 = vunpack.c.h.b16 %v15
  %v204 = vunpack.c.l.b16 %v16
  %v205 = vunpack.c.l.b16 %v17
  %v206 = vunpack.c.h.b16 %v17
  %v207 = vunpack.c.l.b16 %v18
  %v208 = vunpack.c.h.b16 %v18
  %v209 = vunpack.c.l.b16 %v19
  %v210 = vunpack.c.h.b16 %v19
  %v211 = vunpack.c.l.b16 %v20
  %v212 = vunpack.c.h.b16 %v20
  %v213 = vunpack.c.l.b16 %v21
  %v214 = vunpack.c.l.b16 %v22
  %v215 = vunpack.c.h.b16 %v22
  %v216 = vunpack.c.l.b16 %v23
  %v217 = vunpack.c.h.b16 %v23
  %v218 = vunpack.c.l.b16 %v24
  %v219 = vunpack.c.h.b16 %v24
  %v220 = vunpack.c.l.b16 %v25
  %v221 = vunpack.c.h.b16 %v25
  %v222 = vunpack.c.l.b16 %v26
  %v223 = vunpack.c.l.b16 %v27
  %v224 = vunpack.c.h.b16 %v27
  %v225 = vunpack.c.l.b16 %v28
  %v226 = vunpack.c.h.b16 %v28
  %v227 = vunpack.c.l.b16 %v29
  %v228 = vunpack.c.h.b16 %v29
  %v229 = vunpack.c.l.b16 %v30
  %v230 = vunpack.c.h.b16 %v30
  %v231 = vunpack.c.l.b16 %v31
  %v232 = vpack.c.b16 %v205, %v196
  %v233 = vpack.c.b16 %v206, %v197
  %v234 = vpack.c.b16 %v207, %v198
  %v235 = vpack.c.b16 %v208, %v199
  %v236 = vpack.c.b16 %v209, %v200
  %v237 = vpack.c.b16 %v210, %v201
  %v238 = vpack.c.b16 %v211, %v202
  %v239 = vpack.c.b16 %v212, %v203
  %v240 = vpack.c.b16 %v213, %v204
  %v241 = vpack.c.b16 %v223, %v214
  %v242 = vpack.c.b16 %v224, %v215
  %v243 = vpack.c.b16 %v225, %v216
  %v244 = vpack.c.b16 %v226, %v217
  %v245 = vpack.c.b16 %v227, %v218
  %v246 = vpack.c.b16 %v228, %v219
  %v247 = vpack.c.b16 %v229, %v220
  %v248 = vpack.c.b16 %v230, %v221
  %v249 = vpack.c.b16 %v231, %v222
  %v412 = vunpack.c.l.b16 %v32
  %v413 = vunpack.c.l.b16 %v33
  %v414 = vunpack.c.l.b16 %v34
  %v415 = vunpack.c.l.b16 %v35
  %v416 = vunpack.c.l.b16 %v36
  %v417 = vunpack.c.l.b16 %v37
  %v418 = vunpack.c.l.b16 %v38
  %v419 = vunpack.c.l.b16 %v39
  %v420 = vunpack.c.l.b16 %v40
  %v421 = vunpack.c.l.b16 %v41
  %v422 = vunpack.c.l.b16 %v42
  %v423 = vunpack.c.l.b16 %v43
  %v424 = vunpack.c.l.b16 %v44
  %v425 = vunpack.c.l.b16 %v45
  %v426 = vunpack.c.l.b16 %v46
  %v427 = vunpack.c.l.b16 %v47
  %v428 = vunpack.c.l.b16 %v48
  %v429 = vunpack.c.l.b16 %v49
  %v430 = vunpack.c.l.b16 %v50
  %v431 = vunpack.c.l.b16 %v51
  %v432 = vunpack.c.l.b16 %v52
  %v433 = vunpack.c.l.b16 %v53
  %v434 = vunpack.c.l.b16 %v54
  %v435 = vunpack.c.l.b16 %v55
  %v436 = vunpack.c.l.b16 %v56
  %v437 = vunpack.c.l.b16 %v57
  %v438 = vunpack.c.l.b16 %v58
  %v439 = vunpack.c.l.b16 %v59
  %v440 = vunpack.c.l.b16 %v60
  %v441 = vunpack.c.l.b16 %v61
  %v442 = vunpack.c.l.b16 %v62
  %v443 = vunpack.c.l.b16 %v63
  %v444 = vunpack.c.l.b16 %v64
  %v445 = vunpack.c.l.b16 %v65
  %v446 = vunpack.c.l.b16 %v66
  %v447 = vunpack.c.l.b16 %v67
  %v448 = vunpack.c.l.b16 %v68
  %v449 = vunpack.c.l.b16 %v69
  %v450 = vunpack.c.l.b16 %v70
  %v451 = vunpack.c.l.b16 %v71
  %v452 = vunpack.c.l.b16 %v72
  %v453 = vunpack.c.l.b16 %v73
  %v454 = vunpack.c.l.b16 %v74
  %v455 = vunpack.c.l.b16 %v75
  %v456 = vunpack.c.l.b16 %v76
  %v457 = vunpack.c.l.b16 %v77
  %v458 = vunpack.c.l.b16 %v78
  %v459 = vunpack.c.l.b16 %v79
  %v460 = vunpack.c.l.b16 %v80
  %v461 = vunpack.c.l.b16 %v81
  %v462 = vunpack.c.l.b16 %v82
  %v463 = vunpack.c.l.b16 %v83
  %v464 = vunpack.c.l.b16 %v84
  %v465 = vunpack.c.l.b16 %v85
  %v466 = vunpack.c.l.b16 %v86
  %v467 = vunpack.c.l.b16 %v87
  %v468 = vunpack.c.l.b16 %v88
  %v469 = vunpack.c.l.b16 %v89
  %v470 = vunpack.c.l.b16 %v90
  %v471 = vunpack.c.l.b16 %v91
  %v472 = vunpack.c.l.b16 %v92
  %v473 = vunpack.c.l.b16 %v93
  %v474 = vunpack.c.l.b16 %v94
  %v475 = vunpack.c.l.b16 %v95
  %v476 = vunpack.c.l.b16 %v96
  %v477 = vunpack.c.l.b16 %v97
  %v478 = vunpack.c.l.b16 %v98
  %v479 = vunpack.c.l.b16 %v99
  %v480 = vunpack.c.l.b16 %v100
  %v481 = vunpack.c.l.b16 %v101
  %v482 = vunpack.c.l.b16 %v102
  %v483 = vunpack.c.l.b16 %v103
  %v484 = vunpack.c.l.b16 %v104
  %v485 = vunpack.c.l.b16 %v105
  %v486 = vunpack.c.l.b16 %v106
  %v487 = vunpack.c.l.b16 %v107
  %v488 = vunpack.c.l.b16 %v108
  %v489 = vunpack.c.l.b16 %v109
  %v490 = vunpack.c.l.b16 %v110
  %v491 = vunpack.c.l.b16 %v111
  %v492 = vunpack.c.l.b16 %v112
  %v493 = vunpack.c.l.b16 %v113
  %v494 = vunpack.c.l.b16 %v114
  %v495 = vunpack.c.l.b16 %v115
  %v496 = vunpack.c.l.b16 %v116
  %v497 = vunpack.c.l.b16 %v117
  %v498 = vunpack.c.l.b16 %v118
  %v499 = vunpack.c.l.b16 %v119
  %v500 = vunpack.c.l.b16 %v120
  %v501 = vunpack.c.l.b16 %v121
  %v502 = vunpack.c.l.b16 %v122
  %v503 = vunpack.c.l.b16 %v123
  %v504 = vunpack.c.l.b16 %v124
  %v505 = vunpack.c.l.b16 %v125
  %v506 = vunpack.c.l.b16 %v126
  %v507 = vunpack.c.l.b16 %v127
  %v508 = vunpack.c.l.b16 %v128
  %v509 = vunpack.c.l.b16 %v129
  %v510 = vunpack.c.l.b16 %v130
  %v511 = vunpack.c.l.b16 %v131
  %v512 = vunpack.c.l.b16 %v132
  %v513 = vunpack.c.l.b16 %v133
  %v514 = vunpack.c.l.b16 %v134
  %v515 = vunpack.c.l.b16 %v135
  %v516 = vunpack.c.l.b16 %v136
  %v517 = vunpack.c.l.b16 %v137
  %v518 = vunpack.c.l.b16 %v138
  %v519 = vunpack.c.l.b16 %v139
  %v520 = vunpack.c.l.b16 %v140
  %v521 = vunpack.c.l.b16 %v141
  %v522 = vunpack.c.l.b16 %v142
  %v523 = vunpack.c.l.b16 %v143
  %v524 = vunpack.c.l.b16 %v144
  %v525 = vunpack.c.l.b16 %v145
  %v526 = vunpack.c.l.b16 %v146
  %v527 = vunpack.c.l.b16 %v147
  %v528 = vunpack.c.l.b16 %v148
  %v529 = vunpack.c.l.b16 %v149
  %v530 = vunpack.c.l.b16 %v150
  %v531 = vunpack.c.l.b16 %v151
  %v532 = vunpack.c.l.b16 %v152
  %v533 = vunpack.c.l.b16 %v153
  %v534 = vunpack.c.l.b16 %v154
  %v535 = vunpack.c.l.b16 %v155
  %v536 = vunpack.c.l.b16 %v156
  %v537 = vunpack.c.l.b16 %v157
  %v538 = vunpack.c.l.b16 %v158
  %v539 = vunpack.c.l.b16 %v159
  %v540 = vunpack.c.l.b16 %v160
  %v541 = vunpack.c.l.b16 %v161
  %v542 = vunpack.c.l.b16 %v162
  %v543 = vunpack.c.l.b16 %v163
  %v544 = vunpack.c.l.b16 %v164
  %v545 = vunpack.c.l.b16 %v165
  %v546 = vunpack.c.l.b16 %v166
  %v547 = vunpack.c.l.b16 %v167
  %v548 = vunpack.c.l.b16 %v168
  %v549 = vunpack.c.l.b16 %v169
  %v550 = vunpack.c.l.b16 %v170
  %v551 = vunpack.c.l.b16 %v171
  %v552 = vunpack.c.l.b16 %v172
  %v553 = vunpack.c.l.b16 %v173
  %v554 = vunpack.c.l.b16 %v174
  %v555 = vunpack.c.l.b16 %v175
  %v556 = vpack.c.b16 %v413, %v412
  %v557 = vpack.c.b16 %v415, %v414
  %v558 = vpack.c.b16 %v417, %v416
  %v559 = vpack.c.b16 %v419, %v418
  %v560 = vpack.c.b16 %v421, %v420
  %v561 = vpack.c.b16 %v423, %v422
  %v562 = vpack.c.b16 %v425, %v424
  %v563 = vpack.c.b16 %v427, %v426
  %v564 = vpack.c.b16 %v429, %v428
  %v565 = vpack.c.b16 %v431, %v430
  %v566 = vpack.c.b16 %v433, %v432
  %v567 = vpack.c.b16 %v435, %v434
  %v568 = vpack.c.b16 %v437, %v436
  %v569 = vpack.c.b16 %v439, %v438
  %v570 = vpack.c.b16 %v441, %v440
  %v571 = vpack.c.b16 %v443, %v442
  %v572 = vpack.c.b16 %v445, %v444
  %v573 = vpack.c.b16 %v447, %v446
  %v574 = vpack.c.b16 %v449, %v448
  %v575 = vpack.c.b16 %v451, %v450
  %v576 = vpack.c.b16 %v453, %v452
  %v577 = vpack.c.b16 %v455, %v454
  %v578 = vpack.c.b16 %v457, %v456
  %v579 = vpack.c.b16 %v459, %v458
  %v580 = vpack.c.b16 %v461, %v460
  %v581 = vpack.c.b16 %v463, %v462
  %v582 = vpack.c.b16 %v465, %v464
  %v583 = vpack.c.b16 %v467, %v466
  %v584 = vpack.c.b16 %v469, %v468
  %v585 = vpack.c.b16 %v471, %v470
  %v586 = vpack.c.b16 %v473, %v472
  %v587 = vpack.c.b16 %v475, %v474
  %v588 = vpack.c.b16 %v477, %v476
  %v589 = vpack.c.b16 %v479, %v478
  %v590 = vpack.c.b16 %v481, %v480
  %v591 = vpack.c.b16 %v483, %v482
  %v592 = vpack.c.b16 %v485, %v484
  %v593 = vpack.c.b16 %v487, %v486
  %v594 = vpack.c.b16 %v489, %v488
  %v595 = vpack.c.b16 %v491, %v490
  %v596 = vpack.c.b16 %v493, %v492
  %v597 = vpack.c.b16 %v495, %v494
  %v598 = vpack.c.b16 %v497, %v496
  %v599 = vpack.c.b16 %v499, %v498
  %v600 = vpack.c.b16 %v501, %v500
  %v601 = vpack.c.b16 %v503, %v502
  %v602 = vpack.c.b16 %v505, %v504
  %v603 = vpack.c.b16 %v507, %v506
  %v604 = vpack.c.b16 %v509, %v508
  %v605 = vpack.c.b16 %v511, %v510
  %v606 = vpack.c.b16 %v513, %v512
  %v607 = vpack.c.b16 %v515, %v514
  %v608 = vpack.c.b16 %v517, %v516
  %v609 = vpack.c.b16 %v519, %v518
  %v610 = vpack.c.b16 %v521, %v520
  %v611 = vpack.c.b16 %v523, %v522
  %v612 = vpack.c.b16 %v525, %v524
  %v613 = vpack.c.b16 %v527, %v526
  %v614 = vpack.c.b16 %v529, %v528
  %v615 = vpack.c.b16 %v531, %v530
  %v616 = vpack.c.b16 %v533, %v532
  %v617 = vpack.c.b16 %v535, %v534
  %v618 = vpack.c.b16 %v537, %v536
  %v619 = vpack.c.b16 %v539, %v538
  %v620 = vpack.c.b16 %v541, %v540
  %v621 = vpack.c.b16 %v543, %v542
  %v622 = vpack.c.b16 %v545, %v544
  %v623 = vpack.c.b16 %v547, %v546
  %v624 = vpack.c.b16 %v549, %v548
  %v625 = vpack.c.b16 %v551, %v550
  %v626 = vpack.c.b16 %v553, %v552
  %v627 = vpack.c.b16 %v555, %v554
  %700 = vmatprep.subr.bf16.mxu0 0
  %701 = vmatpush1.bf16.msra.mxu0 %v556
  %702 = vmatprep.subr.bf16.mxu0 0
  %703 = vmatpush1.bf16.msra.mxu0 %v557
  %704 = vmatprep.subr.bf16.mxu0 0
  %705 = vmatpush1.bf16.msra.mxu0 %v558
  %706 = vmatprep.subr.bf16.mxu0 0
  %707 = vmatpush1.bf16.msra.mxu0 %v559
  %708 = vmatprep.subr.bf16.mxu0 0
  %709 = vmatpush1.bf16.msra.mxu0 %v560
  %710 = vmatprep.subr.bf16.mxu0 0
  %711 = vmatpush1.bf16.msra.mxu0 %v561
  %712 = vmatprep.subr.bf16.mxu0 0
  %713 = vmatpush1.bf16.msra.mxu0 %v562
  %714 = vmatprep.subr.bf16.mxu0 0
  %715 = vmatpush1.bf16.msra.mxu0 %v563
  %716 = vmatprep.subr.bf16.mxu0 0
  %717 = vmatpush1.bf16.msra.mxu0 %v564
  %718 = vmatprep.subr.bf16.mxu0 0
  %719 = vmatpush1.bf16.msra.mxu0 %v565
  %720 = vmatprep.subr.bf16.mxu0 0
  %721 = vmatpush1.bf16.msra.mxu0 %v566
  %722 = vmatprep.subr.bf16.mxu0 0
  %723 = vmatpush1.bf16.msra.mxu0 %v567
  %724 = vmatprep.subr.bf16.mxu0 0
  %725 = vmatpush1.bf16.msra.mxu0 %v568
  %726 = vmatprep.subr.bf16.mxu0 0
  %727 = vmatpush1.bf16.msra.mxu0 %v569
  %728 = vmatprep.subr.bf16.mxu0 0
  %729 = vmatpush1.bf16.msra.mxu0 %v570
  %730 = vmatprep.subr.bf16.mxu0 0
  %731 = vmatpush1.bf16.msra.mxu0 %v571
  %732 = vmatprep.mubr.bf16.mxu0 %v233
  %733 = vmatmul.mubr.bf16.gmra.mrb[0].mxu0 %v232
  %v734 = vpop.f32.mrb[0].mxu0
  %v735 = vadd.f32 0.0, %v734
  %v736 = vpop.f32.mrb[0].mxu0
  %v737 = vpop.f32.mrb[0].mxu0
  %v738 = vadd.f32 0.0, %v737
  %v739 = vpop.f32.mrb[0].mxu0
  %740 = vmatprep.mubr.bf16.mxu0 %v242
  %741 = vmatmul.mubr.bf16.gmra.mrb[0].mxu0 %v241
  %v742 = vpop.f32.mrb[0].mxu0
  %v743 = vadd.f32 0.0, %v742
  %v744 = vpop.f32.mrb[0].mxu0
  %v745 = vpop.f32.mrb[0].mxu0
  %v746 = vadd.f32 0.0, %v745
  %v747 = vpop.f32.mrb[0].mxu0
  %748 = vdwg.mxu0
  %749 = vmatprep.subr.bf16.mxu0 0
  %750 = vmatpush1.bf16.msra.mxu0 %v572
  %751 = vmatprep.subr.bf16.mxu0 0
  %752 = vmatpush1.bf16.msra.mxu0 %v573
  %753 = vmatprep.subr.bf16.mxu0 0
  %754 = vmatpush1.bf16.msra.mxu0 %v574
  %755 = vmatprep.subr.bf16.mxu0 0
  %756 = vmatpush1.bf16.msra.mxu0 %v575
  %757 = vmatprep.subr.bf16.mxu0 0
  %758 = vmatpush1.bf16.msra.mxu0 %v576
  %759 = vmatprep.subr.bf16.mxu0 0
  %760 = vmatpush1.bf16.msra.mxu0 %v577
  %761 = vmatprep.subr.bf16.mxu0 0
  %762 = vmatpush1.bf16.msra.mxu0 %v578
  %763 = vmatprep.subr.bf16.mxu0 0
  %764 = vmatpush1.bf16.msra.mxu0 %v579
  %765 = vmatprep.subr.bf16.mxu0 0
  %766 = vmatpush1.bf16.msra.mxu0 %v580
  %767 = vmatprep.subr.bf16.mxu0 0
  %768 = vmatpush1.bf16.msra.mxu0 %v581
  %769 = vmatprep.subr.bf16.mxu0 0
  %770 = vmatpush1.bf16.msra.mxu0 %v582
  %771 = vmatprep.subr.bf16.mxu0 0
  %772 = vmatpush1.bf16.msra.mxu0 %v583
  %773 = vmatprep.subr.bf16.mxu0 0
  %774 = vmatpush1.bf16.msra.mxu0 %v584
  %775 = vmatprep.subr.bf16.mxu0 0
  %776 = vmatpush1.bf16.msra.mxu0 %v585
  %777 = vmatprep.subr.bf16.mxu0 0
  %778 = vmatpush1.bf16.msra.mxu0 %v586
  %779 = vmatprep.subr.bf16.mxu0 0
  %780 = vmatpush1.bf16.msra.mxu0 %v587
  %781 = vmatprep.mubr.bf16.mxu0 %v235
  %782 = vmatmul.mubr.bf16.gmra.mrb[0].mxu0 %v234
  %v783 = vpop.f32.mrb[0].mxu0
  %v784 = vadd.f32 %v735, %v783
  %v785 = vpop.f32.mrb[0].mxu0
  %v786 = vpop.f32.mrb[0].mxu0
  %v787 = vadd.f32 %v738, %v786
  %v788 = vpop.f32.mrb[0].mxu0
  %789 = vmatprep.mubr.bf16.mxu0 %v244
  %790 = vmatmul.mubr.bf16.gmra.mrb[0].mxu0 %v243
  %v791 = vpop.f32.mrb[0].mxu0
  %v792 = vadd.f32 %v743, %v791
  %v793 = vpop.f32.mrb[0].mxu0
  %v794 = vpop.f32.mrb[0].mxu0
  %v795 = vadd.f32 %v746, %v794
  %v796 = vpop.f32.mrb[0].mxu0
  %797 = vdwg.mxu0
  %798 = vmatprep.subr.bf16.mxu0 0
  %799 = vmatpush1.bf16.msra.mxu0 %v588
  %800 = vmatprep.subr.bf16.mxu0 0
  %801 = vmatpush1.bf16.msra.mxu0 %v589
  %802 = vmatprep.subr.bf16.mxu0 0
  %803 = vmatpush1.bf16.msra.mxu0 %v590
  %804 = vmatprep.subr.bf16.mxu0 0
  %805 = vmatpush1.bf16.msra.mxu0 %v591
  %806 = vmatprep.subr.bf16.mxu0 0
  %807 = vmatpush1.bf16.msra.mxu0 %v592
  %808 = vmatprep.subr.bf16.mxu0 0
  %809 = vmatpush1.bf16.msra.mxu0 %v593
  %810 = vmatprep.subr.bf16.mxu0 0
  %811 = vmatpush1.bf16.msra.mxu0 %v594
  %812 = vmatprep.subr.bf16.mxu0 0
  %813 = vmatpush1.bf16.msra.mxu0 %v595
  %814 = vmatprep.subr.bf16.mxu0 0
  %815 = vmatpush1.bf16.msra.mxu0 %v596
  %816 = vmatprep.subr.bf16.mxu0 0
  %817 = vmatpush1.bf16.msra.mxu0 %v597
  %818 = vmatprep.subr.bf16.mxu0 0
  %819 = vmatpush1.bf16.msra.mxu0 %v598
  %820 = vmatprep.subr.bf16.mxu0 0
  %821 = vmatpush1.bf16.msra.mxu0 %v599
  %822 = vmatprep.subr.bf16.mxu0 0
  %823 = vmatpush1.bf16.msra.mxu0 %v600
  %824 = vmatprep.subr.bf16.mxu0 0
  %825 = vmatpush1.bf16.msra.mxu0 %v601
  %826 = vmatprep.subr.bf16.mxu0 0
  %827 = vmatpush1.bf16.msra.mxu0 %v602
  %828 = vmatprep.subr.bf16.mxu0 0
  %829 = vmatpush1.bf16.msra.mxu0 %v603
  %830 = vmatprep.mubr.bf16.mxu0 %v237
  %831 = vmatmul.mubr.bf16.gmra.mrb[0].mxu0 %v236
  %v832 = vpop.f32.mrb[0].mxu0
  %v833 = vadd.f32 %v784, %v832
  %v834 = vpop.f32.mrb[0].mxu0
  %v835 = vpop.f32.mrb[0].mxu0
  %v836 = vadd.f32 %v787, %v835
  %v837 = vpop.f32.mrb[0].mxu0
  %838 = vmatprep.mubr.bf16.mxu0 %v246
  %839 = vmatmul.mubr.bf16.gmra.mrb[0].mxu0 %v245
  %v840 = vpop.f32.mrb[0].mxu0
  %v841 = vadd.f32 %v792, %v840
  %v842 = vpop.f32.mrb[0].mxu0
  %v843 = vpop.f32.mrb[0].mxu0
  %v844 = vadd.f32 %v795, %v843
  %v845 = vpop.f32.mrb[0].mxu0
  %846 = vdwg.mxu0
  %847 = vmatprep.subr.bf16.mxu0 0
  %848 = vmatpush1.bf16.msra.mxu0 %v604
  %849 = vmatprep.subr.bf16.mxu0 0
  %850 = vmatpush1.bf16.msra.mxu0 %v605
  %851 = vmatprep.subr.bf16.mxu0 0
  %852 = vmatpush1.bf16.msra.mxu0 %v606
  %853 = vmatprep.subr.bf16.mxu0 0
  %854 = vmatpush1.bf16.msra.mxu0 %v607
  %855 = vmatprep.subr.bf16.mxu0 0
  %856 = vmatpush1.bf16.msra.mxu0 %v608
  %857 = vmatprep.subr.bf16.mxu0 0
  %858 = vmatpush1.bf16.msra.mxu0 %v609
  %859 = vmatprep.subr.bf16.mxu0 0
  %860 = vmatpush1.bf16.msra.mxu0 %v610
  %861 = vmatprep.subr.bf16.mxu0 0
  %862 = vmatpush1.bf16.msra.mxu0 %v611
  %863 = vmatprep.subr.bf16.mxu0 0
  %864 = vmatpush1.bf16.msra.mxu0 %v612
  %865 = vmatprep.subr.bf16.mxu0 0
  %866 = vmatpush1.bf16.msra.mxu0 %v613
  %867 = vmatprep.subr.bf16.mxu0 0
  %868 = vmatpush1.bf16.msra.mxu0 %v614
  %869 = vmatprep.subr.bf16.mxu0 0
  %870 = vmatpush1.bf16.msra.mxu0 %v615
  %871 = vmatprep.subr.bf16.mxu0 0
  %872 = vmatpush1.bf16.msra.mxu0 %v616
  %873 = vmatprep.subr.bf16.mxu0 0
  %874 = vmatpush1.bf16.msra.mxu0 %v617
  %875 = vmatprep.subr.bf16.mxu0 0
  %876 = vmatpush1.bf16.msra.mxu0 %v618
  %877 = vmatprep.subr.bf16.mxu0 0
  %878 = vmatpush1.bf16.msra.mxu0 %v619
  %879 = vmatprep.mubr.bf16.mxu0 %v239
  %880 = vmatmul.mubr.bf16.gmra.mrb[0].mxu0 %v238
  %v881 = vpop.f32.mrb[0].mxu0
  %v882 = vadd.f32 %v833, %v881
  %v883 = vpop.f32.mrb[0].mxu0
  %v884 = vpop.f32.mrb[0].mxu0
  %v885 = vadd.f32 %v836, %v884
  %v886 = vpop.f32.mrb[0].mxu0
  %887 = vmatprep.mubr.bf16.mxu0 %v248
  %888 = vmatmul.mubr.bf16.gmra.mrb[0].mxu0 %v247
  %v889 = vpop.f32.mrb[0].mxu0
  %v890 = vadd.f32 %v841, %v889
  %v891 = vpop.f32.mrb[0].mxu0
  %v892 = vpop.f32.mrb[0].mxu0
  %v893 = vadd.f32 %v844, %v892
  %v894 = vpop.f32.mrb[0].mxu0
  %895 = vdwg.mxu0
  %896 = vmatprep.subr.bf16.mxu0 0
  %897 = vmatpush1.bf16.msra.mxu0 %v620
  %898 = vmatprep.subr.bf16.mxu0 0
  %899 = vmatpush1.bf16.msra.mxu0 %v621
  %900 = vmatprep.subr.bf16.mxu0 0
  %901 = vmatpush1.bf16.msra.mxu0 %v622
  %902 = vmatprep.subr.bf16.mxu0 0
  %903 = vmatpush1.bf16.msra.mxu0 %v623
  %904 = vmatprep.subr.bf16.mxu0 0
  %905 = vmatpush1.bf16.msra.mxu0 %v624
  %906 = vmatprep.subr.bf16.mxu0 0
  %907 = vmatpush1.bf16.msra.mxu0 %v625
  %908 = vmatprep.subr.bf16.mxu0 0
  %909 = vmatpush1.bf16.msra.mxu0 %v626
  %910 = vmatprep.subr.bf16.mxu0 0
  %911 = vmatpush1.bf16.msra.mxu0 %v627
  %912 = vmatprep.subr.bf16.mxu0 0
  %913 = vmatpush1.bf16.msra.mxu0 0
  %914 = vmatprep.subr.bf16.mxu0 0
  %915 = vmatpush1.bf16.msra.mxu0 0
  %916 = vmatprep.subr.bf16.mxu0 0
  %917 = vmatpush1.bf16.msra.mxu0 0
  %918 = vmatprep.subr.bf16.mxu0 0
  %919 = vmatpush1.bf16.msra.mxu0 0
  %920 = vmatprep.subr.bf16.mxu0 0
  %921 = vmatpush1.bf16.msra.mxu0 0
  %922 = vmatprep.subr.bf16.mxu0 0
  %923 = vmatpush1.bf16.msra.mxu0 0
  %924 = vmatprep.subr.bf16.mxu0 0
  %925 = vmatpush1.bf16.msra.mxu0 0
  %926 = vmatprep.subr.bf16.mxu0 0
  %927 = vmatpush1.bf16.msra.mxu0 0
  %928 = vmatprep.mubr.bf16.mxu0 0
  %929 = vmatmul.mubr.bf16.gmra.mrb[0].mxu0 %v240
  %v930 = vpop.f32.mrb[0].mxu0
  %v931 = vadd.f32 %v882, %v930
  %v932 = vpop.f32.mrb[0].mxu0
  %v933 = vpop.f32.mrb[0].mxu0
  %v934 = vadd.f32 %v885, %v933
  %v935 = vpop.f32.mrb[0].mxu0
  %936 = vmatprep.mubr.bf16.mxu0 0
  %937 = vmatmul.mubr.bf16.gmra.mrb[0].mxu0 %v249
  %v938 = vpop.f32.mrb[0].mxu0
  %v939 = vadd.f32 %v890, %v938
  %v940 = vpop.f32.mrb[0].mxu0
  %v941 = vpop.f32.mrb[0].mxu0
  %v942 = vadd.f32 %v893, %v941
  %v943 = vpop.f32.mrb[0].mxu0
  %944 = vdwg.mxu0
  %945 = vst [vmem:[%s2] sm:$0xff] %v931
  %946 = vst [vmem:[%s2 + $0x8] sm:$0xff] %v934
  %947 = vst [vmem:[%s2 + $0x10] sm:$0xff] %v939
  %948 = vst [vmem:[%s2 + $0x18] sm:$0xff] %v942
  // Predicated region
  $region10: #{semantic_learner_forward.35} parent=0 // pred_check
    _
  $region11: #{semantic_learner_forward.35} parent=0 // pred_check_branch
    %950 = sbr.rel (0) target = $region13
  $region12: #{semantic_learner_forward.35} parent=0 // pred_region
    _
  $region13: #{semantic_learner_forward.35} parent=0 // pred_fallthru
    _
  // Predicated region
  $region14: #{semantic_learner_forward.35} parent=0 // pred_check
    _
  $region15: #{semantic_learner_forward.35} parent=0 // pred_check_branch
    %952 = sbr.rel (0) target = $region17
  $region16: #{semantic_learner_forward.35} parent=0 // pred_region
    _
  $region17: #{semantic_learner_forward.35} parent=0 // pred_fallthru
    _

// kernel: semantic_learner_forward.65
$region0: #{semantic_learner_forward.65}
  #allocation0 [shape = 'u32[]', space=smem, size = 0x4, offset = 0x4, fixed_abs, tag = 'smem constant byte address 0x4 - core index']
  #allocation1 [shape = 'u32[144,128]{1,0:T(1,128)}', space=vmem, size = 0x12000, scoped, tag = 'internal scratch']
  %s0 = inlined_call_operand.vmem [shape: bf16[32,128], index: 0, kind: input, shape index: {}]
  %s1 = inlined_call_operand.vmem [shape: bf16[128,128], index: 1, kind: input, shape index: {}]
  %s2 = inlined_call_operand.vmem [shape: f32[1,128], index: 2, kind: input, shape index: {}]
  %s3 = inlined_call_operand.vmem [shape: f32[32,128], index: 3, kind: output, shape index: {}]
  %s4 = sld [smem:[#allocation0]]
  $region22: #{semantic_learner_forward.65} parent=0
    _
  %s6 = ssub.s32 1, %s4
  %s7 = scalar_select 0, %s6, %s4
  // Predicated region
  $region2: #{semantic_learner_forward.65} parent=0 // pred_check
    _
  $region3: #{semantic_learner_forward.65} parent=0 // pred_check_branch
    %9 = sbr.rel (0) target = $region5
  $region4: #{semantic_learner_forward.65} parent=0 // pred_region
    _
  $region5: #{semantic_learner_forward.65} parent=0 // pred_fallthru
    _
  // Predicated region
  $region6: #{semantic_learner_forward.65} parent=0 // pred_check
    _
  $region7: #{semantic_learner_forward.65} parent=0 // pred_check_branch
    %11 = sbr.rel (0) target = $region9
  $region8: #{semantic_learner_forward.65} parent=0 // pred_region
    _
  $region9: #{semantic_learner_forward.65} parent=0 // pred_fallthru
    _
  // Predicated region
  $region10: #{semantic_learner_forward.65} parent=0 // pred_check
    _
  $region11: #{semantic_learner_forward.65} parent=0 // pred_check_branch
    %13 = sbr.rel (0) target = $region13
  $region12: #{semantic_learner_forward.65} parent=0 // pred_region
    _
  $region13: #{semantic_learner_forward.65} parent=0 // pred_fallthru
    _
  %v15 = vld [vmem:[%s0] sm:$0xf]
  %v16 = vld [vmem:[%s0 + $0x4] sm:$0xf]
  %v17 = vld [vmem:[%s0 + $0x8] sm:$0xf]
  %v18 = vld [vmem:[%s0 + $0xc] sm:$0xf]
  %v19 = vld [vmem:[%s1] sm:$0xf]
  %v20 = vld [vmem:[%s1 + $0x4] sm:$0xf]
  %v21 = vld [vmem:[%s1 + $0x8] sm:$0xf]
  %v22 = vld [vmem:[%s1 + $0xc] sm:$0xf]
  %v23 = vld [vmem:[%s1 + $0x10] sm:$0xf]
  %v24 = vld [vmem:[%s1 + $0x14] sm:$0xf]
  %v25 = vld [vmem:[%s1 + $0x18] sm:$0xf]
  %v26 = vld [vmem:[%s1 + $0x1c] sm:$0xf]
  %v27 = vld [vmem:[%s1 + $0x20] sm:$0xf]
  %v28 = vld [vmem:[%s1 + $0x24] sm:$0xf]
  %v29 = vld [vmem:[%s1 + $0x28] sm:$0xf]
  %v30 = vld [vmem:[%s1 + $0x2c] sm:$0xf]
  %v31 = vld [vmem:[%s1 + $0x30] sm:$0xf]
  %v32 = vld [vmem:[%s1 + $0x34] sm:$0xf]
  %v33 = vld [vmem:[%s1 + $0x38] sm:$0xf]
  %v34 = vld [vmem:[%s1 + $0x3c] sm:$0xf]
  %v35 = vld [vmem:[%s2] sm:$0x1]
  %v37 = vlaneseq
  %v38 = vshrl.u32 %v37, 7
  %v39 = vsub.s32 0, %v38
  %v40 = vrot.slane %v35, %v39
  %v46 = vunpack.c.l.b16 %v15
  %v47 = vunpack.c.l.b16 %v16
  %v48 = vunpack.c.l.b16 %v17
  %v49 = vunpack.c.l.b16 %v18
  %v50 = vpack.c.b16 %v47, %v46
  %v51 = vpack.c.b16 %v49, %v48
  %v70 = vunpack.c.l.b16 %v19
  %v71 = vunpack.c.l.b16 %v20
  %v72 = vunpack.c.l.b16 %v21
  %v73 = vunpack.c.l.b16 %v22
  %v74 = vunpack.c.l.b16 %v23
  %v75 = vunpack.c.l.b16 %v24
  %v76 = vunpack.c.l.b16 %v25
  %v77 = vunpack.c.l.b16 %v26
  %v78 = vunpack.c.l.b16 %v27
  %v79 = vunpack.c.l.b16 %v28
  %v80 = vunpack.c.l.b16 %v29
  %v81 = vunpack.c.l.b16 %v30
  %v82 = vunpack.c.l.b16 %v31
  %v83 = vunpack.c.l.b16 %v32
  %v84 = vunpack.c.l.b16 %v33
  %v85 = vunpack.c.l.b16 %v34
  %v86 = vpack.c.b16 %v71, %v70
  %v87 = vpack.c.b16 %v73, %v72
  %v88 = vpack.c.b16 %v75, %v74
  %v89 = vpack.c.b16 %v77, %v76
  %v90 = vpack.c.b16 %v79, %v78
  %v91 = vpack.c.b16 %v81, %v80
  %v92 = vpack.c.b16 %v83, %v82
  %v93 = vpack.c.b16 %v85, %v84
  %102 = vmatprep.subr.bf16.mxu0 0
  %103 = vmatpush1.bf16.msra.mxu0 %v86
  %104 = vmatprep.subr.bf16.mxu0 0
  %105 = vmatpush1.bf16.msra.mxu0 %v87
  %106 = vmatprep.subr.bf16.mxu0 0
  %107 = vmatpush1.bf16.msra.mxu0 %v88
  %108 = vmatprep.subr.bf16.mxu0 0
  %109 = vmatpush1.bf16.msra.mxu0 %v89
  %110 = vmatprep.subr.bf16.mxu0 0
  %111 = vmatpush1.bf16.msra.mxu0 %v90
  %112 = vmatprep.subr.bf16.mxu0 0
  %113 = vmatpush1.bf16.msra.mxu0 %v91
  %114 = vmatprep.subr.bf16.mxu0 0
  %115 = vmatpush1.bf16.msra.mxu0 %v92
  %116 = vmatprep.subr.bf16.mxu0 0
  %117 = vmatpush1.bf16.msra.mxu0 %v93
  %118 = vmatprep.subr.bf16.mxu0 0
  %119 = vmatpush1.bf16.msra.mxu0 0
  %120 = vmatprep.subr.bf16.mxu0 0
  %121 = vmatpush1.bf16.msra.mxu0 0
  %122 = vmatprep.subr.bf16.mxu0 0
  %123 = vmatpush1.bf16.msra.mxu0 0
  %124 = vmatprep.subr.bf16.mxu0 0
  %125 = vmatpush1.bf16.msra.mxu0 0
  %126 = vmatprep.subr.bf16.mxu0 0
  %127 = vmatpush1.bf16.msra.mxu0 0
  %128 = vmatprep.subr.bf16.mxu0 0
  %129 = vmatpush1.bf16.msra.mxu0 0
  %130 = vmatprep.subr.bf16.mxu0 0
  %131 = vmatpush1.bf16.msra.mxu0 0
  %132 = vmatprep.subr.bf16.mxu0 0
  %133 = vmatpush1.bf16.msra.mxu0 0
  %134 = vmatprep.mubr.bf16.mxu0 0
  %135 = vmatmul.mubr.bf16.gmra.mrb[0].mxu0 %v50
  %v136 = vpop.f32.mrb[0].mxu0
  %v137 = vadd.f32 %v40, %v136
  %v138 = vpop.f32.mrb[0].mxu0
  %v139 = vpop.f32.mrb[0].mxu0
  %v140 = vadd.f32 %v40, %v139
  %v141 = vpop.f32.mrb[0].mxu0
  %142 = vmatprep.mubr.bf16.mxu0 0
  %143 = vmatmul.mubr.bf16.gmra.mrb[0].mxu0 %v51
  %v144 = vpop.f32.mrb[0].mxu0
  %v145 = vadd.f32 %v40, %v144
  %v146 = vpop.f32.mrb[0].mxu0
  %v147 = vpop.f32.mrb[0].mxu0
  %v148 = vadd.f32 %v40, %v147
  %v149 = vpop.f32.mrb[0].mxu0
  %150 = vdwg.mxu0
  %151 = vst [vmem:[%s3] sm:$0xff] %v137
  %152 = vst [vmem:[%s3 + $0x8] sm:$0xff] %v140
  %153 = vst [vmem:[%s3 + $0x10] sm:$0xff] %v145
  %154 = vst [vmem:[%s3 + $0x18] sm:$0xff] %v148
  // Predicated region
  $region14: #{semantic_learner_forward.65} parent=0 // pred_check
    _
  $region15: #{semantic_learner_forward.65} parent=0 // pred_check_branch
    %156 = sbr.rel (0) target = $region17
  $region16: #{semantic_learner_forward.65} parent=0 // pred_region
    _
  $region17: #{semantic_learner_forward.65} parent=0 // pred_fallthru
    _
  // Predicated region
  $region18: #{semantic_learner_forward.65} parent=0 // pred_check
    _
  $region19: #{semantic_learner_forward.65} parent=0 // pred_check_branch
    %158 = sbr.rel (0) target = $region21
  $region20: #{semantic_learner_forward.65} parent=0 // pred_region
    _
  $region21: #{semantic_learner_forward.65} parent=0 // pred_fallthru
    _

</llo_original>
